<compile_context>
chip_gen: v7x
topology: tpu7x:2x2x1
jax: 0.10.0
libtpu: 0.0.40
codegen_flags: <defaults>
</compile_context>

<pallas_src>
import jax
import jax.numpy as jnp
from jax import lax
from jax.experimental import pallas as pl
from jax.experimental.pallas import tpu as pltpu


def grn_kernel(x_ref, wih_ref, whh_ref, b_ref, lnw_ref, lnb_ref,
               aw_ref, ab_ref, dw_ref, db_ref, out_ref, xw_ref):
    n_iters, n_tile, n_feats = x_ref.shape
    n_hids = wih_ref.shape[1]

    wih = wih_ref[...]              # (F, H)
    whh = whh_ref[...]              # (H, H)
    lnw = lnw_ref[...]              # (1, H)
    lnb = lnb_ref[...]              # (1, H)
    aw = aw_ref[...]                # (1, H)
    ab = ab_ref[...]                # (1, 1)

    # --- hoisted input projection: one big MXU matmul, (b_ih + b_hh) folded in ---
    xw = (jnp.dot(x_ref[...].reshape(n_iters * n_tile, n_feats), wih,
                  preferred_element_type=jnp.float32)
          + b_ref[...])                                   # (I*N, H)
    xw_ref[...] = xw.reshape(n_iters, n_tile, n_hids)

    # h0 = X[0] @ W_ih^T + b_ih + b_hh  (reference init: no ReLU, no W_hh)
    h0 = xw_ref[0]

    m0 = jnp.full((n_tile, 1), -jnp.inf, jnp.float32)
    l0 = jnp.zeros((n_tile, 1), jnp.float32)
    ctx0 = jnp.zeros((n_tile, n_hids), jnp.float32)

    def body(i, carry):
        h, m, l, ctx = carry
        # serial RNN cell: h_i = relu(xw[i] + h_{i-1} @ W_hh^T)    (MXU chain)
        h = jnp.maximum(
            xw_ref[i] + jnp.dot(h, whh, preferred_element_type=jnp.float32), 0.0)
        # LayerNorm over the hidden dim (VPU/XLU/EUP, overlaps the MXU chain)
        mu = jnp.mean(h, axis=-1, keepdims=True)
        cen = h - mu
        var = jnp.mean(cen * cen, axis=-1, keepdims=True)
        ln = cen * lax.rsqrt(var + 1e-5) * lnw + lnb              # (n_tile, H)
        # attention logit for this iteration (lane reduce, no MXU)
        logit = jnp.sum(ln * aw, axis=-1, keepdims=True) + ab     # (n_tile, 1)
        # online softmax over the iteration axis fused with the readout context
        m_new = jnp.maximum(m, logit)
        alpha = jnp.exp(m - m_new)
        p = jnp.exp(logit - m_new)
        l = alpha * l + p
        ctx = alpha * ctx + p * ln
        return h, m_new, l, ctx

    unroll = True if n_iters <= 16 else 8
    _, _, l_fin, ctx_fin = lax.fori_loop(0, n_iters, body, (h0, m0, l0, ctx0),
                                         unroll=unroll)

    # out = (sum_i att_i * ln_i) @ W_d^T + b_d   (exact: softmax weights sum to 1)
    ctx_n = ctx_fin * pl.reciprocal(l_fin, approx=False)
    out_ref[...] = (jnp.dot(ctx_n, dw_ref[...], preferred_element_type=jnp.float32)
                    + db_ref[...]).astype(out_ref.dtype)


def _round_up(x, m):
    return ((x + m - 1) // m) * m


def _round_down(x, m):
    return (x // m) * m


def _vmem_capacity_bytes():
    try:
        info = pltpu.get_tpu_info()
        cap = int(getattr(info, "vmem_capacity_bytes", 0) or 0)
        if cap > 0:
            return cap
    except Exception:
        pass
    return 64 * 1024 * 1024          # conservative default (v7x per-core VMEM)


def _pick_node_tile(n_nodes, n_iters, n_feats, n_hids, c_pad, budget_bytes):
    """Largest node tile within the VMEM budget (weights counted double-buffered),
    MXU-height aligned, capped so the node grid has >= 2 steps (v7x megacore)."""
    # per-node f32 footprint: double-buffered X block + xw scratch (+ matmul temp
    # headroom) + double-buffered output block + loop carries / working set.
    per_node = 4 * (2 * n_iters * n_feats + 2 * n_iters * n_hids
                    + 2 * c_pad + 6 * n_hids + 16)
    weights = 4 * 2 * (n_feats * n_hids + n_hids * n_hids + 6 * n_hids
                       + n_hids * c_pad + c_pad + 4)
    usable = max(budget_bytes - weights, 8 * per_node)
    max_tile = max(8, usable // per_node)

    # cap so dimension_semantics=("parallel",) has >= 2 grid steps to shard.
    half = _round_up(max(-(-n_nodes // 2), 8), 8)
    tile = min(max_tile, half)

    if tile >= 256:
        tile = _round_down(tile, 256)      # MXU height on v6e/v7x
    elif tile >= 128:
        tile = 128                         # MXU height on v5e
    else:
        tile = max(8, _round_down(tile, 8))
    return tile


def grn_forward(X, params):
    (wih, whh, bih, bhh, lnw, lnb, aw, ab, dw, db) = params
    n_iters, n_nodes, n_feats = X.shape
    n_hids = wih.shape[0]
    n_class = dw.shape[0]

    # Pad the class dim to a multiple of 128 so the readout matmul / output stores
    # are lane-dense; sliced back below.
    c_pad = _round_up(n_class, 128)
    dw_p = jnp.zeros((n_hids, c_pad), jnp.float32).at[:, :n_class].set(
        dw.T.astype(jnp.float32))
    db_p = jnp.zeros((1, c_pad), jnp.float32).at[:, :n_class].set(
        db.reshape(1, -1).astype(jnp.float32))

    # Generation-aware VMEM policy.
    vmem_cap = _vmem_capacity_bytes()
    vmem_limit = min(vmem_cap * 3 // 4, 64 * 1024 * 1024)
    tile_budget = (vmem_limit * 3) // 4        # headroom for compiler temporaries

    n_tile = _pick_node_tile(n_nodes, n_iters, n_feats, n_hids, c_pad, tile_budget)
    n_pad = _round_up(n_nodes, n_tile)
    grid = (n_pad // n_tile,)

    Xf = X.astype(jnp.float32)
    if n_pad != n_nodes:
        Xf = jnp.pad(Xf, ((0, 0), (0, n_pad - n_nodes), (0, 0)))

    args = (
        Xf,                                               # (I, Np, F)
        wih.T.astype(jnp.float32),                        # (F, H)
        whh.T.astype(jnp.float32),                        # (H, H)
        (bih + bhh).reshape(1, -1).astype(jnp.float32),   # folded projection bias
        lnw.reshape(1, -1).astype(jnp.float32),
        lnb.reshape(1, -1).astype(jnp.float32),
        aw.reshape(1, -1).astype(jnp.float32),            # (1, H) — used elementwise
        ab.reshape(1, 1).astype(jnp.float32),
        dw_p,                                             # (H, Cp)
        db_p,                                             # (1, Cp)
    )

    def full(shape):
        return pl.BlockSpec(shape, lambda n, _s=shape: (0,) * len(_s))

    in_specs = [
        pl.BlockSpec((n_iters, n_tile, n_feats), lambda n: (0, n, 0)),
        full((n_feats, n_hids)),
        full((n_hids, n_hids)),
        full((1, n_hids)),
        full((1, n_hids)),
        full((1, n_hids)),
        full((1, n_hids)),
        full((1, 1)),
        full((n_hids, c_pad)),
        full((1, c_pad)),
    ]
    out_specs = pl.BlockSpec((n_tile, c_pad), lambda n: (n, 0))

    out_padded = pl.pallas_call(
        grn_kernel,
        out_shape=jax.ShapeDtypeStruct((n_pad, c_pad), jnp.float32),
        grid_spec=pltpu.PrefetchScalarGridSpec(
            num_scalar_prefetch=0,
            grid=grid,
            in_specs=in_specs,
            out_specs=out_specs,
            scratch_shapes=[pltpu.VMEM((n_iters, n_tile, n_hids), jnp.float32)],
        ),
        compiler_params=pltpu.CompilerParams(
            dimension_semantics=("parallel",),
            vmem_limit_bytes=vmem_limit),
    )(*args)

    return out_padded[:n_nodes, :n_class]


def grn_reference(X, params):
    """Pure-JAX reference, mirrors the PyTorch forward (eval mode)."""
    (wih, whh, bih, bhh, lnw, lnb, aw, ab, dw, db) = params
    n_iters = X.shape[0]
    h = X[0] @ wih.T + bhh + bih
    hs = []
    for i in range(n_iters):
        h = jax.nn.relu(X[i] @ wih.T + bih + h @ whh.T + bhh)
        hs.append(h)
    outs = jnp.stack(hs, 0)
    mean = outs.mean(-1, keepdims=True)
    var = ((outs - mean) ** 2).mean(-1, keepdims=True)
    outs = (outs - mean) / jnp.sqrt(var + 1e-5) * lnw + lnb
    logits = outs @ aw.T + ab                     # (I, N, 1)
    att = jax.nn.softmax(logits, axis=0)
    od = outs @ dw.T + db                         # (I, N, C)
    return jnp.sum(od * att, axis=0)


def make_params(key, n_feats, n_hids, n_class):
    ks = jax.random.split(key, 8)
    s_rnn = 1.0 / jnp.sqrt(n_hids)
    s_lin = 1.0 / jnp.sqrt(n_hids)
    u = lambda k, shape, s: jax.random.uniform(k, shape, jnp.float32, -s, s)
    wih = u(ks[0], (n_hids, n_feats), s_rnn)
    whh = u(ks[1], (n_hids, n_hids), s_rnn)
    bih = u(ks[2], (n_hids,), s_rnn)
    bhh = u(ks[3], (n_hids,), s_rnn)
    lnw = jnp.ones((n_hids,), jnp.float32)
    lnb = jnp.zeros((n_hids,), jnp.float32)
    aw = u(ks[4], (1, n_hids), s_lin)
    ab = u(ks[5], (1,), s_lin)
    dw = u(ks[6], (n_class, n_hids), s_lin)
    db = u(ks[7], (n_class,), s_lin)
    return (wih, whh, bih, bhh, lnw, lnb, aw, ab, dw, db)


if __name__ == "__main__":
    n_iters, n_nodes, n_feats, n_hids, n_class = 8, 16, 8, 32, 4

    key = jax.random.PRNGKey(0)
    kx, kp = jax.random.split(key)
    X = jax.random.normal(kx, (n_iters, n_nodes, n_feats), jnp.float32)
    params = make_params(kp, n_feats, n_hids, n_class)

    out = jax.block_until_ready(grn_forward(X, params))
    ref = jax.block_until_ready(grn_reference(X, params))

    assert out.shape == (n_nodes, n_class)
    assert jnp.allclose(out, ref, atol=1e-4, rtol=1e-4), "mismatch vs reference"
    # TODO(synk): dropout (d1, d2, d3) is treated as inference-mode identity.
    print("KERNEL_OK")
</pallas_src>

<mosaic_0001>
module attributes {stable_mosaic.version = 11 : i64} {
  func.func @grn_kernel(%arg0: i32, %arg1: memref<8x8x8xf32, #tpu.memory_space<vmem>>, %arg2: memref<8x32xf32, #tpu.memory_space<vmem>>, %arg3: memref<32x32xf32, #tpu.memory_space<vmem>>, %arg4: memref<1x32xf32, #tpu.memory_space<vmem>>, %arg5: memref<1x32xf32, #tpu.memory_space<vmem>>, %arg6: memref<1x32xf32, #tpu.memory_space<vmem>>, %arg7: memref<1x32xf32, #tpu.memory_space<vmem>>, %arg8: memref<1x1xf32, #tpu.memory_space<vmem>>, %arg9: memref<32x128xf32, #tpu.memory_space<vmem>>, %arg10: memref<1x128xf32, #tpu.memory_space<vmem>>, %arg11: memref<8x128xf32, #tpu.memory_space<vmem>>, %arg12: memref<8x8x32xf32, #tpu.memory_space<vmem>>) attributes {dimension_semantics = [#tpu.dimension_semantics<parallel>], iteration_bounds = array<i64: 2>, scalar_prefetch = 0 : i64, scratch_operands = 1 : i64, tpu.core_type = #tpu.core_type<tc>, window_params = [{transform_indices = @transform_0, window_bounds = array<i64: 8, 8, 8>}, {pipeline_mode = #tpu.pipeline_mode<synchronous>, transform_indices = @transform_1, window_bounds = array<i64: 8, 32>}, {pipeline_mode = #tpu.pipeline_mode<synchronous>, transform_indices = @transform_2, window_bounds = array<i64: 32, 32>}, {pipeline_mode = #tpu.pipeline_mode<synchronous>, transform_indices = @transform_3, window_bounds = array<i64: 1, 32>}, {pipeline_mode = #tpu.pipeline_mode<synchronous>, transform_indices = @transform_4, window_bounds = array<i64: 1, 32>}, {pipeline_mode = #tpu.pipeline_mode<synchronous>, transform_indices = @transform_5, window_bounds = array<i64: 1, 32>}, {pipeline_mode = #tpu.pipeline_mode<synchronous>, transform_indices = @transform_6, window_bounds = array<i64: 1, 32>}, {pipeline_mode = #tpu.pipeline_mode<synchronous>, transform_indices = @transform_7, window_bounds = array<i64: 1, 1>}, {pipeline_mode = #tpu.pipeline_mode<synchronous>, transform_indices = @transform_8, window_bounds = array<i64: 32, 128>}, {pipeline_mode = #tpu.pipeline_mode<synchronous>, transform_indices = @transform_9, window_bounds = array<i64: 1, 128>}, {transform_indices = @transform_10, window_bounds = array<i64: 8, 128>}]} {
    %c0 = arith.constant 0 : index
    %c0_0 = arith.constant 0 : index
    %0 = vector.load %arg2[%c0, %c0_0] : memref<8x32xf32, #tpu.memory_space<vmem>>, vector<8x32xf32>
    %c0_1 = arith.constant 0 : index
    %c0_2 = arith.constant 0 : index
    %1 = vector.load %arg3[%c0_1, %c0_2] : memref<32x32xf32, #tpu.memory_space<vmem>>, vector<32x32xf32>
    %c0_3 = arith.constant 0 : index
    %c0_4 = arith.constant 0 : index
    %2 = vector.load %arg5[%c0_3, %c0_4] : memref<1x32xf32, #tpu.memory_space<vmem>>, vector<1x32xf32>
    %c0_5 = arith.constant 0 : index
    %c0_6 = arith.constant 0 : index
    %3 = vector.load %arg6[%c0_5, %c0_6] : memref<1x32xf32, #tpu.memory_space<vmem>>, vector<1x32xf32>
    %c0_7 = arith.constant 0 : index
    %c0_8 = arith.constant 0 : index
    %4 = vector.load %arg7[%c0_7, %c0_8] : memref<1x32xf32, #tpu.memory_space<vmem>>, vector<1x32xf32>
    %c0_9 = arith.constant 0 : index
    %c0_10 = arith.constant 0 : index
    %5 = vector.load %arg8[%c0_9, %c0_10] : memref<1x1xf32, #tpu.memory_space<vmem>>, vector<1x1xf32>
    %c0_11 = arith.constant 0 : index
    %c0_12 = arith.constant 0 : index
    %c0_13 = arith.constant 0 : index
    %6 = vector.load %arg1[%c0_11, %c0_12, %c0_13] : memref<8x8x8xf32, #tpu.memory_space<vmem>>, vector<8x8x8xf32>
    %7 = vector.shape_cast %6 : vector<8x8x8xf32> to vector<64x8xf32>
    %cst = arith.constant dense<0.000000e+00> : vector<64x32xf32>
    %8 = tpu.matmul %7, %0, %cst {dimension_numbers = #tpu.dot_dimension_numbers<[1], [0], [0], [1], [0, 0, 1, 1], [], []>} : vector<64x8xf32>, vector<8x32xf32>, vector<64x32xf32> -> vector<64x32xf32>
    %c0_14 = arith.constant 0 : index
    %c0_15 = arith.constant 0 : index
    %9 = vector.load %arg4[%c0_14, %c0_15] : memref<1x32xf32, #tpu.memory_space<vmem>>, vector<1x32xf32>
    %10 = vector.broadcast %9 : vector<1x32xf32> to vector<64x32xf32>
    %11 = arith.addf %8, %10 : vector<64x32xf32>
    %12 = vector.shape_cast %11 : vector<64x32xf32> to vector<8x8x32xf32>
    %c0_16 = arith.constant 0 : index
    %c0_17 = arith.constant 0 : index
    %c0_18 = arith.constant 0 : index
    %13 = vector.load %arg12[%c0_16, %c0_17, %c0_18] : memref<8x8x32xf32, #tpu.memory_space<vmem>>, vector<8x8x32xf32>
    tpu.vector_store %arg12[%c0_16, %c0_17, %c0_18], %12 {strides = array<i32>} : memref<8x8x32xf32, #tpu.memory_space<vmem>>, vector<8x8x32xf32>,
    %c0_19 = arith.constant 0 : index
    %c0_20 = arith.constant 0 : index
    %c0_21 = arith.constant 0 : index
    %14 = vector.load %arg12[%c0_19, %c0_20, %c0_21] : memref<8x8x32xf32, #tpu.memory_space<vmem>>, vector<1x8x32xf32>
    %15 = vector.shape_cast %14 : vector<1x8x32xf32> to vector<8x32xf32>
    %cst_22 = arith.constant 0xFF800000 : f32
    %16 = vector.broadcast %cst_22 : f32 to vector<8x1xf32>
    %cst_23 = arith.constant 0.000000e+00 : f32
    %17 = vector.broadcast %cst_23 : f32 to vector<8x1xf32>
    %cst_24 = arith.constant 0.000000e+00 : f32
    %18 = vector.broadcast %cst_24 : f32 to vector<8x32xf32>
    %c0_i32 = arith.constant 0 : i32
    %19 = arith.index_cast %c0_i32 : i32 to index
    %c0_25 = arith.constant 0 : index
    %c0_26 = arith.constant 0 : index
    %20 = vector.load %arg12[%19, %c0_25, %c0_26] : memref<8x8x32xf32, #tpu.memory_space<vmem>>, vector<1x8x32xf32>
    %21 = vector.shape_cast %20 : vector<1x8x32xf32> to vector<8x32xf32>
    %cst_27 = arith.constant dense<0.000000e+00> : vector<8x32xf32>
    %22 = tpu.matmul %15, %1, %cst_27 {dimension_numbers = #tpu.dot_dimension_numbers<[1], [0], [0], [1], [0, 0, 1, 1], [], []>} : vector<8x32xf32>, vector<32x32xf32>, vector<8x32xf32> -> vector<8x32xf32>
    %23 = arith.addf %21, %22 : vector<8x32xf32>
    %cst_28 = arith.constant 0.000000e+00 : f32
    %24 = vector.broadcast %cst_28 : f32 to vector<8x32xf32>
    %25 = arith.maximumf %23, %24 : vector<8x32xf32>
    %cst_29 = arith.constant dense<0.000000e+00> : vector<8xf32>
    %26 = vector.multi_reduction <add>, %25, %cst_29 [1] : vector<8x32xf32> to vector<8xf32>
    %27 = vector.shape_cast %26 : vector<8xf32> to vector<8x1xf32>
    %cst_30 = arith.constant 3.200000e+01 : f32
    %28 = vector.broadcast %cst_30 : f32 to vector<8x1xf32>
    %29 = arith.divf %27, %28 : vector<8x1xf32>
    %30 = vector.broadcast %29 : vector<8x1xf32> to vector<8x32xf32>
    %31 = arith.subf %25, %30 : vector<8x32xf32>
    %32 = arith.mulf %31, %31 : vector<8x32xf32>
    %cst_31 = arith.constant dense<0.000000e+00> : vector<8xf32>
    %33 = vector.multi_reduction <add>, %32, %cst_31 [1] : vector<8x32xf32> to vector<8xf32>
    %34 = vector.shape_cast %33 : vector<8xf32> to vector<8x1xf32>
    %cst_32 = arith.constant 3.200000e+01 : f32
    %35 = vector.broadcast %cst_32 : f32 to vector<8x1xf32>
    %36 = arith.divf %34, %35 : vector<8x1xf32>
    %cst_33 = arith.constant 9.99999974E-6 : f32
    %37 = vector.broadcast %cst_33 : f32 to vector<8x1xf32>
    %38 = arith.addf %36, %37 : vector<8x1xf32>
    %39 = math.rsqrt %38 : vector<8x1xf32>
    %40 = vector.broadcast %39 : vector<8x1xf32> to vector<8x32xf32>
    %41 = arith.mulf %31, %40 : vector<8x32xf32>
    %42 = vector.broadcast %2 : vector<1x32xf32> to vector<8x32xf32>
    %43 = arith.mulf %41, %42 : vector<8x32xf32>
    %44 = vector.broadcast %3 : vector<1x32xf32> to vector<8x32xf32>
    %45 = arith.addf %43, %44 : vector<8x32xf32>
    %46 = vector.broadcast %4 : vector<1x32xf32> to vector<8x32xf32>
    %47 = arith.mulf %45, %46 : vector<8x32xf32>
    %cst_34 = arith.constant dense<0.000000e+00> : vector<8xf32>
    %48 = vector.multi_reduction <add>, %47, %cst_34 [1] : vector<8x32xf32> to vector<8xf32>
    %49 = vector.shape_cast %48 : vector<8xf32> to vector<8x1xf32>
    %50 = vector.broadcast %5 : vector<1x1xf32> to vector<8x1xf32>
    %51 = arith.addf %49, %50 : vector<8x1xf32>
    %52 = arith.maximumf %16, %51 : vector<8x1xf32>
    %53 = arith.subf %16, %52 : vector<8x1xf32>
    %54 = math.exp %53 : vector<8x1xf32>
    %55 = arith.subf %51, %52 : vector<8x1xf32>
    %56 = math.exp %55 : vector<8x1xf32>
    %57 = arith.mulf %54, %17 : vector<8x1xf32>
    %58 = arith.addf %57, %56 : vector<8x1xf32>
    %59 = vector.broadcast %54 : vector<8x1xf32> to vector<8x32xf32>
    %60 = arith.mulf %59, %18 : vector<8x32xf32>
    %61 = vector.broadcast %56 : vector<8x1xf32> to vector<8x32xf32>
    %62 = arith.mulf %61, %45 : vector<8x32xf32>
    %63 = arith.addf %60, %62 : vector<8x32xf32>
    %c1_i32 = arith.constant 1 : i32
    %64 = arith.index_cast %c1_i32 : i32 to index
    %c0_35 = arith.constant 0 : index
    %c0_36 = arith.constant 0 : index
    %65 = vector.load %arg12[%64, %c0_35, %c0_36] : memref<8x8x32xf32, #tpu.memory_space<vmem>>, vector<1x8x32xf32>
    %66 = vector.shape_cast %65 : vector<1x8x32xf32> to vector<8x32xf32>
    %cst_37 = arith.constant dense<0.000000e+00> : vector<8x32xf32>
    %67 = tpu.matmul %25, %1, %cst_37 {dimension_numbers = #tpu.dot_dimension_numbers<[1], [0], [0], [1], [0, 0, 1, 1], [], []>} : vector<8x32xf32>, vector<32x32xf32>, vector<8x32xf32> -> vector<8x32xf32>
    %68 = arith.addf %66, %67 : vector<8x32xf32>
    %cst_38 = arith.constant 0.000000e+00 : f32
    %69 = vector.broadcast %cst_38 : f32 to vector<8x32xf32>
    %70 = arith.maximumf %68, %69 : vector<8x32xf32>
    %cst_39 = arith.constant dense<0.000000e+00> : vector<8xf32>
    %71 = vector.multi_reduction <add>, %70, %cst_39 [1] : vector<8x32xf32> to vector<8xf32>
    %72 = vector.shape_cast %71 : vector<8xf32> to vector<8x1xf32>
    %cst_40 = arith.constant 3.200000e+01 : f32
    %73 = vector.broadcast %cst_40 : f32 to vector<8x1xf32>
    %74 = arith.divf %72, %73 : vector<8x1xf32>
    %75 = vector.broadcast %74 : vector<8x1xf32> to vector<8x32xf32>
    %76 = arith.subf %70, %75 : vector<8x32xf32>
    %77 = arith.mulf %76, %76 : vector<8x32xf32>
    %cst_41 = arith.constant dense<0.000000e+00> : vector<8xf32>
    %78 = vector.multi_reduction <add>, %77, %cst_41 [1] : vector<8x32xf32> to vector<8xf32>
    %79 = vector.shape_cast %78 : vector<8xf32> to vector<8x1xf32>
    %cst_42 = arith.constant 3.200000e+01 : f32
    %80 = vector.broadcast %cst_42 : f32 to vector<8x1xf32>
    %81 = arith.divf %79, %80 : vector<8x1xf32>
    %cst_43 = arith.constant 9.99999974E-6 : f32
    %82 = vector.broadcast %cst_43 : f32 to vector<8x1xf32>
    %83 = arith.addf %81, %82 : vector<8x1xf32>
    %84 = math.rsqrt %83 : vector<8x1xf32>
    %85 = vector.broadcast %84 : vector<8x1xf32> to vector<8x32xf32>
    %86 = arith.mulf %76, %85 : vector<8x32xf32>
    %87 = vector.broadcast %2 : vector<1x32xf32> to vector<8x32xf32>
    %88 = arith.mulf %86, %87 : vector<8x32xf32>
    %89 = vector.broadcast %3 : vector<1x32xf32> to vector<8x32xf32>
    %90 = arith.addf %88, %89 : vector<8x32xf32>
    %91 = vector.broadcast %4 : vector<1x32xf32> to vector<8x32xf32>
    %92 = arith.mulf %90, %91 : vector<8x32xf32>
    %cst_44 = arith.constant dense<0.000000e+00> : vector<8xf32>
    %93 = vector.multi_reduction <add>, %92, %cst_44 [1] : vector<8x32xf32> to vector<8xf32>
    %94 = vector.shape_cast %93 : vector<8xf32> to vector<8x1xf32>
    %95 = vector.broadcast %5 : vector<1x1xf32> to vector<8x1xf32>
    %96 = arith.addf %94, %95 : vector<8x1xf32>
    %97 = arith.maximumf %52, %96 : vector<8x1xf32>
    %98 = arith.subf %52, %97 : vector<8x1xf32>
    %99 = math.exp %98 : vector<8x1xf32>
    %100 = arith.subf %96, %97 : vector<8x1xf32>
    %101 = math.exp %100 : vector<8x1xf32>
    %102 = arith.mulf %99, %58 : vector<8x1xf32>
    %103 = arith.addf %102, %101 : vector<8x1xf32>
    %104 = vector.broadcast %99 : vector<8x1xf32> to vector<8x32xf32>
    %105 = arith.mulf %104, %63 : vector<8x32xf32>
    %106 = vector.broadcast %101 : vector<8x1xf32> to vector<8x32xf32>
    %107 = arith.mulf %106, %90 : vector<8x32xf32>
    %108 = arith.addf %105, %107 : vector<8x32xf32>
    %c2_i32 = arith.constant 2 : i32
    %109 = arith.index_cast %c2_i32 : i32 to index
    %c0_45 = arith.constant 0 : index
    %c0_46 = arith.constant 0 : index
    %110 = vector.load %arg12[%109, %c0_45, %c0_46] : memref<8x8x32xf32, #tpu.memory_space<vmem>>, vector<1x8x32xf32>
    %111 = vector.shape_cast %110 : vector<1x8x32xf32> to vector<8x32xf32>
    %cst_47 = arith.constant dense<0.000000e+00> : vector<8x32xf32>
    %112 = tpu.matmul %70, %1, %cst_47 {dimension_numbers = #tpu.dot_dimension_numbers<[1], [0], [0], [1], [0, 0, 1, 1], [], []>} : vector<8x32xf32>, vector<32x32xf32>, vector<8x32xf32> -> vector<8x32xf32>
    %113 = arith.addf %111, %112 : vector<8x32xf32>
    %cst_48 = arith.constant 0.000000e+00 : f32
    %114 = vector.broadcast %cst_48 : f32 to vector<8x32xf32>
    %115 = arith.maximumf %113, %114 : vector<8x32xf32>
    %cst_49 = arith.constant dense<0.000000e+00> : vector<8xf32>
    %116 = vector.multi_reduction <add>, %115, %cst_49 [1] : vector<8x32xf32> to vector<8xf32>
    %117 = vector.shape_cast %116 : vector<8xf32> to vector<8x1xf32>
    %cst_50 = arith.constant 3.200000e+01 : f32
    %118 = vector.broadcast %cst_50 : f32 to vector<8x1xf32>
    %119 = arith.divf %117, %118 : vector<8x1xf32>
    %120 = vector.broadcast %119 : vector<8x1xf32> to vector<8x32xf32>
    %121 = arith.subf %115, %120 : vector<8x32xf32>
    %122 = arith.mulf %121, %121 : vector<8x32xf32>
    %cst_51 = arith.constant dense<0.000000e+00> : vector<8xf32>
    %123 = vector.multi_reduction <add>, %122, %cst_51 [1] : vector<8x32xf32> to vector<8xf32>
    %124 = vector.shape_cast %123 : vector<8xf32> to vector<8x1xf32>
    %cst_52 = arith.constant 3.200000e+01 : f32
    %125 = vector.broadcast %cst_52 : f32 to vector<8x1xf32>
    %126 = arith.divf %124, %125 : vector<8x1xf32>
    %cst_53 = arith.constant 9.99999974E-6 : f32
    %127 = vector.broadcast %cst_53 : f32 to vector<8x1xf32>
    %128 = arith.addf %126, %127 : vector<8x1xf32>
    %129 = math.rsqrt %128 : vector<8x1xf32>
    %130 = vector.broadcast %129 : vector<8x1xf32> to vector<8x32xf32>
    %131 = arith.mulf %121, %130 : vector<8x32xf32>
    %132 = vector.broadcast %2 : vector<1x32xf32> to vector<8x32xf32>
    %133 = arith.mulf %131, %132 : vector<8x32xf32>
    %134 = vector.broadcast %3 : vector<1x32xf32> to vector<8x32xf32>
    %135 = arith.addf %133, %134 : vector<8x32xf32>
    %136 = vector.broadcast %4 : vector<1x32xf32> to vector<8x32xf32>
    %137 = arith.mulf %135, %136 : vector<8x32xf32>
    %cst_54 = arith.constant dense<0.000000e+00> : vector<8xf32>
    %138 = vector.multi_reduction <add>, %137, %cst_54 [1] : vector<8x32xf32> to vector<8xf32>
    %139 = vector.shape_cast %138 : vector<8xf32> to vector<8x1xf32>
    %140 = vector.broadcast %5 : vector<1x1xf32> to vector<8x1xf32>
    %141 = arith.addf %139, %140 : vector<8x1xf32>
    %142 = arith.maximumf %97, %141 : vector<8x1xf32>
    %143 = arith.subf %97, %142 : vector<8x1xf32>
    %144 = math.exp %143 : vector<8x1xf32>
    %145 = arith.subf %141, %142 : vector<8x1xf32>
    %146 = math.exp %145 : vector<8x1xf32>
    %147 = arith.mulf %144, %103 : vector<8x1xf32>
    %148 = arith.addf %147, %146 : vector<8x1xf32>
    %149 = vector.broadcast %144 : vector<8x1xf32> to vector<8x32xf32>
    %150 = arith.mulf %149, %108 : vector<8x32xf32>
    %151 = vector.broadcast %146 : vector<8x1xf32> to vector<8x32xf32>
    %152 = arith.mulf %151, %135 : vector<8x32xf32>
    %153 = arith.addf %150, %152 : vector<8x32xf32>
    %c3_i32 = arith.constant 3 : i32
    %154 = arith.index_cast %c3_i32 : i32 to index
    %c0_55 = arith.constant 0 : index
    %c0_56 = arith.constant 0 : index
    %155 = vector.load %arg12[%154, %c0_55, %c0_56] : memref<8x8x32xf32, #tpu.memory_space<vmem>>, vector<1x8x32xf32>
    %156 = vector.shape_cast %155 : vector<1x8x32xf32> to vector<8x32xf32>
    %cst_57 = arith.constant dense<0.000000e+00> : vector<8x32xf32>
    %157 = tpu.matmul %115, %1, %cst_57 {dimension_numbers = #tpu.dot_dimension_numbers<[1], [0], [0], [1], [0, 0, 1, 1], [], []>} : vector<8x32xf32>, vector<32x32xf32>, vector<8x32xf32> -> vector<8x32xf32>
    %158 = arith.addf %156, %157 : vector<8x32xf32>
    %cst_58 = arith.constant 0.000000e+00 : f32
    %159 = vector.broadcast %cst_58 : f32 to vector<8x32xf32>
    %160 = arith.maximumf %158, %159 : vector<8x32xf32>
    %cst_59 = arith.constant dense<0.000000e+00> : vector<8xf32>
    %161 = vector.multi_reduction <add>, %160, %cst_59 [1] : vector<8x32xf32> to vector<8xf32>
    %162 = vector.shape_cast %161 : vector<8xf32> to vector<8x1xf32>
    %cst_60 = arith.constant 3.200000e+01 : f32
    %163 = vector.broadcast %cst_60 : f32 to vector<8x1xf32>
    %164 = arith.divf %162, %163 : vector<8x1xf32>
    %165 = vector.broadcast %164 : vector<8x1xf32> to vector<8x32xf32>
    %166 = arith.subf %160, %165 : vector<8x32xf32>
    %167 = arith.mulf %166, %166 : vector<8x32xf32>
    %cst_61 = arith.constant dense<0.000000e+00> : vector<8xf32>
    %168 = vector.multi_reduction <add>, %167, %cst_61 [1] : vector<8x32xf32> to vector<8xf32>
    %169 = vector.shape_cast %168 : vector<8xf32> to vector<8x1xf32>
    %cst_62 = arith.constant 3.200000e+01 : f32
    %170 = vector.broadcast %cst_62 : f32 to vector<8x1xf32>
    %171 = arith.divf %169, %170 : vector<8x1xf32>
    %cst_63 = arith.constant 9.99999974E-6 : f32
    %172 = vector.broadcast %cst_63 : f32 to vector<8x1xf32>
    %173 = arith.addf %171, %172 : vector<8x1xf32>
    %174 = math.rsqrt %173 : vector<8x1xf32>
    %175 = vector.broadcast %174 : vector<8x1xf32> to vector<8x32xf32>
    %176 = arith.mulf %166, %175 : vector<8x32xf32>
    %177 = vector.broadcast %2 : vector<1x32xf32> to vector<8x32xf32>
    %178 = arith.mulf %176, %177 : vector<8x32xf32>
    %179 = vector.broadcast %3 : vector<1x32xf32> to vector<8x32xf32>
    %180 = arith.addf %178, %179 : vector<8x32xf32>
    %181 = vector.broadcast %4 : vector<1x32xf32> to vector<8x32xf32>
    %182 = arith.mulf %180, %181 : vector<8x32xf32>
    %cst_64 = arith.constant dense<0.000000e+00> : vector<8xf32>
    %183 = vector.multi_reduction <add>, %182, %cst_64 [1] : vector<8x32xf32> to vector<8xf32>
    %184 = vector.shape_cast %183 : vector<8xf32> to vector<8x1xf32>
    %185 = vector.broadcast %5 : vector<1x1xf32> to vector<8x1xf32>
    %186 = arith.addf %184, %185 : vector<8x1xf32>
    %187 = arith.maximumf %142, %186 : vector<8x1xf32>
    %188 = arith.subf %142, %187 : vector<8x1xf32>
    %189 = math.exp %188 : vector<8x1xf32>
    %190 = arith.subf %186, %187 : vector<8x1xf32>
    %191 = math.exp %190 : vector<8x1xf32>
    %192 = arith.mulf %189, %148 : vector<8x1xf32>
    %193 = arith.addf %192, %191 : vector<8x1xf32>
    %194 = vector.broadcast %189 : vector<8x1xf32> to vector<8x32xf32>
    %195 = arith.mulf %194, %153 : vector<8x32xf32>
    %196 = vector.broadcast %191 : vector<8x1xf32> to vector<8x32xf32>
    %197 = arith.mulf %196, %180 : vector<8x32xf32>
    %198 = arith.addf %195, %197 : vector<8x32xf32>
    %c4_i32 = arith.constant 4 : i32
    %199 = arith.index_cast %c4_i32 : i32 to index
    %c0_65 = arith.constant 0 : index
    %c0_66 = arith.constant 0 : index
    %200 = vector.load %arg12[%199, %c0_65, %c0_66] : memref<8x8x32xf32, #tpu.memory_space<vmem>>, vector<1x8x32xf32>
    %201 = vector.shape_cast %200 : vector<1x8x32xf32> to vector<8x32xf32>
    %cst_67 = arith.constant dense<0.000000e+00> : vector<8x32xf32>
    %202 = tpu.matmul %160, %1, %cst_67 {dimension_numbers = #tpu.dot_dimension_numbers<[1], [0], [0], [1], [0, 0, 1, 1], [], []>} : vector<8x32xf32>, vector<32x32xf32>, vector<8x32xf32> -> vector<8x32xf32>
    %203 = arith.addf %201, %202 : vector<8x32xf32>
    %cst_68 = arith.constant 0.000000e+00 : f32
    %204 = vector.broadcast %cst_68 : f32 to vector<8x32xf32>
    %205 = arith.maximumf %203, %204 : vector<8x32xf32>
    %cst_69 = arith.constant dense<0.000000e+00> : vector<8xf32>
    %206 = vector.multi_reduction <add>, %205, %cst_69 [1] : vector<8x32xf32> to vector<8xf32>
    %207 = vector.shape_cast %206 : vector<8xf32> to vector<8x1xf32>
    %cst_70 = arith.constant 3.200000e+01 : f32
    %208 = vector.broadcast %cst_70 : f32 to vector<8x1xf32>
    %209 = arith.divf %207, %208 : vector<8x1xf32>
    %210 = vector.broadcast %209 : vector<8x1xf32> to vector<8x32xf32>
    %211 = arith.subf %205, %210 : vector<8x32xf32>
    %212 = arith.mulf %211, %211 : vector<8x32xf32>
    %cst_71 = arith.constant dense<0.000000e+00> : vector<8xf32>
    %213 = vector.multi_reduction <add>, %212, %cst_71 [1] : vector<8x32xf32> to vector<8xf32>
    %214 = vector.shape_cast %213 : vector<8xf32> to vector<8x1xf32>
    %cst_72 = arith.constant 3.200000e+01 : f32
    %215 = vector.broadcast %cst_72 : f32 to vector<8x1xf32>
    %216 = arith.divf %214, %215 : vector<8x1xf32>
    %cst_73 = arith.constant 9.99999974E-6 : f32
    %217 = vector.broadcast %cst_73 : f32 to vector<8x1xf32>
    %218 = arith.addf %216, %217 : vector<8x1xf32>
    %219 = math.rsqrt %218 : vector<8x1xf32>
    %220 = vector.broadcast %219 : vector<8x1xf32> to vector<8x32xf32>
    %221 = arith.mulf %211, %220 : vector<8x32xf32>
    %222 = vector.broadcast %2 : vector<1x32xf32> to vector<8x32xf32>
    %223 = arith.mulf %221, %222 : vector<8x32xf32>
    %224 = vector.broadcast %3 : vector<1x32xf32> to vector<8x32xf32>
    %225 = arith.addf %223, %224 : vector<8x32xf32>
    %226 = vector.broadcast %4 : vector<1x32xf32> to vector<8x32xf32>
    %227 = arith.mulf %225, %226 : vector<8x32xf32>
    %cst_74 = arith.constant dense<0.000000e+00> : vector<8xf32>
    %228 = vector.multi_reduction <add>, %227, %cst_74 [1] : vector<8x32xf32> to vector<8xf32>
    %229 = vector.shape_cast %228 : vector<8xf32> to vector<8x1xf32>
    %230 = vector.broadcast %5 : vector<1x1xf32> to vector<8x1xf32>
    %231 = arith.addf %229, %230 : vector<8x1xf32>
    %232 = arith.maximumf %187, %231 : vector<8x1xf32>
    %233 = arith.subf %187, %232 : vector<8x1xf32>
    %234 = math.exp %233 : vector<8x1xf32>
    %235 = arith.subf %231, %232 : vector<8x1xf32>
    %236 = math.exp %235 : vector<8x1xf32>
    %237 = arith.mulf %234, %193 : vector<8x1xf32>
    %238 = arith.addf %237, %236 : vector<8x1xf32>
    %239 = vector.broadcast %234 : vector<8x1xf32> to vector<8x32xf32>
    %240 = arith.mulf %239, %198 : vector<8x32xf32>
    %241 = vector.broadcast %236 : vector<8x1xf32> to vector<8x32xf32>
    %242 = arith.mulf %241, %225 : vector<8x32xf32>
    %243 = arith.addf %240, %242 : vector<8x32xf32>
    %c5_i32 = arith.constant 5 : i32
    %244 = arith.index_cast %c5_i32 : i32 to index
    %c0_75 = arith.constant 0 : index
    %c0_76 = arith.constant 0 : index
    %245 = vector.load %arg12[%244, %c0_75, %c0_76] : memref<8x8x32xf32, #tpu.memory_space<vmem>>, vector<1x8x32xf32>
    %246 = vector.shape_cast %245 : vector<1x8x32xf32> to vector<8x32xf32>
    %cst_77 = arith.constant dense<0.000000e+00> : vector<8x32xf32>
    %247 = tpu.matmul %205, %1, %cst_77 {dimension_numbers = #tpu.dot_dimension_numbers<[1], [0], [0], [1], [0, 0, 1, 1], [], []>} : vector<8x32xf32>, vector<32x32xf32>, vector<8x32xf32> -> vector<8x32xf32>
    %248 = arith.addf %246, %247 : vector<8x32xf32>
    %cst_78 = arith.constant 0.000000e+00 : f32
    %249 = vector.broadcast %cst_78 : f32 to vector<8x32xf32>
    %250 = arith.maximumf %248, %249 : vector<8x32xf32>
    %cst_79 = arith.constant dense<0.000000e+00> : vector<8xf32>
    %251 = vector.multi_reduction <add>, %250, %cst_79 [1] : vector<8x32xf32> to vector<8xf32>
    %252 = vector.shape_cast %251 : vector<8xf32> to vector<8x1xf32>
    %cst_80 = arith.constant 3.200000e+01 : f32
    %253 = vector.broadcast %cst_80 : f32 to vector<8x1xf32>
    %254 = arith.divf %252, %253 : vector<8x1xf32>
    %255 = vector.broadcast %254 : vector<8x1xf32> to vector<8x32xf32>
    %256 = arith.subf %250, %255 : vector<8x32xf32>
    %257 = arith.mulf %256, %256 : vector<8x32xf32>
    %cst_81 = arith.constant dense<0.000000e+00> : vector<8xf32>
    %258 = vector.multi_reduction <add>, %257, %cst_81 [1] : vector<8x32xf32> to vector<8xf32>
    %259 = vector.shape_cast %258 : vector<8xf32> to vector<8x1xf32>
    %cst_82 = arith.constant 3.200000e+01 : f32
    %260 = vector.broadcast %cst_82 : f32 to vector<8x1xf32>
    %261 = arith.divf %259, %260 : vector<8x1xf32>
    %cst_83 = arith.constant 9.99999974E-6 : f32
    %262 = vector.broadcast %cst_83 : f32 to vector<8x1xf32>
    %263 = arith.addf %261, %262 : vector<8x1xf32>
    %264 = math.rsqrt %263 : vector<8x1xf32>
    %265 = vector.broadcast %264 : vector<8x1xf32> to vector<8x32xf32>
    %266 = arith.mulf %256, %265 : vector<8x32xf32>
    %267 = vector.broadcast %2 : vector<1x32xf32> to vector<8x32xf32>
    %268 = arith.mulf %266, %267 : vector<8x32xf32>
    %269 = vector.broadcast %3 : vector<1x32xf32> to vector<8x32xf32>
    %270 = arith.addf %268, %269 : vector<8x32xf32>
    %271 = vector.broadcast %4 : vector<1x32xf32> to vector<8x32xf32>
    %272 = arith.mulf %270, %271 : vector<8x32xf32>
    %cst_84 = arith.constant dense<0.000000e+00> : vector<8xf32>
    %273 = vector.multi_reduction <add>, %272, %cst_84 [1] : vector<8x32xf32> to vector<8xf32>
    %274 = vector.shape_cast %273 : vector<8xf32> to vector<8x1xf32>
    %275 = vector.broadcast %5 : vector<1x1xf32> to vector<8x1xf32>
    %276 = arith.addf %274, %275 : vector<8x1xf32>
    %277 = arith.maximumf %232, %276 : vector<8x1xf32>
    %278 = arith.subf %232, %277 : vector<8x1xf32>
    %279 = math.exp %278 : vector<8x1xf32>
    %280 = arith.subf %276, %277 : vector<8x1xf32>
    %281 = math.exp %280 : vector<8x1xf32>
    %282 = arith.mulf %279, %238 : vector<8x1xf32>
    %283 = arith.addf %282, %281 : vector<8x1xf32>
    %284 = vector.broadcast %279 : vector<8x1xf32> to vector<8x32xf32>
    %285 = arith.mulf %284, %243 : vector<8x32xf32>
    %286 = vector.broadcast %281 : vector<8x1xf32> to vector<8x32xf32>
    %287 = arith.mulf %286, %270 : vector<8x32xf32>
    %288 = arith.addf %285, %287 : vector<8x32xf32>
    %c6_i32 = arith.constant 6 : i32
    %289 = arith.index_cast %c6_i32 : i32 to index
    %c0_85 = arith.constant 0 : index
    %c0_86 = arith.constant 0 : index
    %290 = vector.load %arg12[%289, %c0_85, %c0_86] : memref<8x8x32xf32, #tpu.memory_space<vmem>>, vector<1x8x32xf32>
    %291 = vector.shape_cast %290 : vector<1x8x32xf32> to vector<8x32xf32>
    %cst_87 = arith.constant dense<0.000000e+00> : vector<8x32xf32>
    %292 = tpu.matmul %250, %1, %cst_87 {dimension_numbers = #tpu.dot_dimension_numbers<[1], [0], [0], [1], [0, 0, 1, 1], [], []>} : vector<8x32xf32>, vector<32x32xf32>, vector<8x32xf32> -> vector<8x32xf32>
    %293 = arith.addf %291, %292 : vector<8x32xf32>
    %cst_88 = arith.constant 0.000000e+00 : f32
    %294 = vector.broadcast %cst_88 : f32 to vector<8x32xf32>
    %295 = arith.maximumf %293, %294 : vector<8x32xf32>
    %cst_89 = arith.constant dense<0.000000e+00> : vector<8xf32>
    %296 = vector.multi_reduction <add>, %295, %cst_89 [1] : vector<8x32xf32> to vector<8xf32>
    %297 = vector.shape_cast %296 : vector<8xf32> to vector<8x1xf32>
    %cst_90 = arith.constant 3.200000e+01 : f32
    %298 = vector.broadcast %cst_90 : f32 to vector<8x1xf32>
    %299 = arith.divf %297, %298 : vector<8x1xf32>
    %300 = vector.broadcast %299 : vector<8x1xf32> to vector<8x32xf32>
    %301 = arith.subf %295, %300 : vector<8x32xf32>
    %302 = arith.mulf %301, %301 : vector<8x32xf32>
    %cst_91 = arith.constant dense<0.000000e+00> : vector<8xf32>
    %303 = vector.multi_reduction <add>, %302, %cst_91 [1] : vector<8x32xf32> to vector<8xf32>
    %304 = vector.shape_cast %303 : vector<8xf32> to vector<8x1xf32>
    %cst_92 = arith.constant 3.200000e+01 : f32
    %305 = vector.broadcast %cst_92 : f32 to vector<8x1xf32>
    %306 = arith.divf %304, %305 : vector<8x1xf32>
    %cst_93 = arith.constant 9.99999974E-6 : f32
    %307 = vector.broadcast %cst_93 : f32 to vector<8x1xf32>
    %308 = arith.addf %306, %307 : vector<8x1xf32>
    %309 = math.rsqrt %308 : vector<8x1xf32>
    %310 = vector.broadcast %309 : vector<8x1xf32> to vector<8x32xf32>
    %311 = arith.mulf %301, %310 : vector<8x32xf32>
    %312 = vector.broadcast %2 : vector<1x32xf32> to vector<8x32xf32>
    %313 = arith.mulf %311, %312 : vector<8x32xf32>
    %314 = vector.broadcast %3 : vector<1x32xf32> to vector<8x32xf32>
    %315 = arith.addf %313, %314 : vector<8x32xf32>
    %316 = vector.broadcast %4 : vector<1x32xf32> to vector<8x32xf32>
    %317 = arith.mulf %315, %316 : vector<8x32xf32>
    %cst_94 = arith.constant dense<0.000000e+00> : vector<8xf32>
    %318 = vector.multi_reduction <add>, %317, %cst_94 [1] : vector<8x32xf32> to vector<8xf32>
    %319 = vector.shape_cast %318 : vector<8xf32> to vector<8x1xf32>
    %320 = vector.broadcast %5 : vector<1x1xf32> to vector<8x1xf32>
    %321 = arith.addf %319, %320 : vector<8x1xf32>
    %322 = arith.maximumf %277, %321 : vector<8x1xf32>
    %323 = arith.subf %277, %322 : vector<8x1xf32>
    %324 = math.exp %323 : vector<8x1xf32>
    %325 = arith.subf %321, %322 : vector<8x1xf32>
    %326 = math.exp %325 : vector<8x1xf32>
    %327 = arith.mulf %324, %283 : vector<8x1xf32>
    %328 = arith.addf %327, %326 : vector<8x1xf32>
    %329 = vector.broadcast %324 : vector<8x1xf32> to vector<8x32xf32>
    %330 = arith.mulf %329, %288 : vector<8x32xf32>
    %331 = vector.broadcast %326 : vector<8x1xf32> to vector<8x32xf32>
    %332 = arith.mulf %331, %315 : vector<8x32xf32>
    %333 = arith.addf %330, %332 : vector<8x32xf32>
    %c7_i32 = arith.constant 7 : i32
    %334 = arith.index_cast %c7_i32 : i32 to index
    %c0_95 = arith.constant 0 : index
    %c0_96 = arith.constant 0 : index
    %335 = vector.load %arg12[%334, %c0_95, %c0_96] : memref<8x8x32xf32, #tpu.memory_space<vmem>>, vector<1x8x32xf32>
    %336 = vector.shape_cast %335 : vector<1x8x32xf32> to vector<8x32xf32>
    %cst_97 = arith.constant dense<0.000000e+00> : vector<8x32xf32>
    %337 = tpu.matmul %295, %1, %cst_97 {dimension_numbers = #tpu.dot_dimension_numbers<[1], [0], [0], [1], [0, 0, 1, 1], [], []>} : vector<8x32xf32>, vector<32x32xf32>, vector<8x32xf32> -> vector<8x32xf32>
    %338 = arith.addf %336, %337 : vector<8x32xf32>
    %cst_98 = arith.constant 0.000000e+00 : f32
    %339 = vector.broadcast %cst_98 : f32 to vector<8x32xf32>
    %340 = arith.maximumf %338, %339 : vector<8x32xf32>
    %cst_99 = arith.constant dense<0.000000e+00> : vector<8xf32>
    %341 = vector.multi_reduction <add>, %340, %cst_99 [1] : vector<8x32xf32> to vector<8xf32>
    %342 = vector.shape_cast %341 : vector<8xf32> to vector<8x1xf32>
    %cst_100 = arith.constant 3.200000e+01 : f32
    %343 = vector.broadcast %cst_100 : f32 to vector<8x1xf32>
    %344 = arith.divf %342, %343 : vector<8x1xf32>
    %345 = vector.broadcast %344 : vector<8x1xf32> to vector<8x32xf32>
    %346 = arith.subf %340, %345 : vector<8x32xf32>
    %347 = arith.mulf %346, %346 : vector<8x32xf32>
    %cst_101 = arith.constant dense<0.000000e+00> : vector<8xf32>
    %348 = vector.multi_reduction <add>, %347, %cst_101 [1] : vector<8x32xf32> to vector<8xf32>
    %349 = vector.shape_cast %348 : vector<8xf32> to vector<8x1xf32>
    %cst_102 = arith.constant 3.200000e+01 : f32
    %350 = vector.broadcast %cst_102 : f32 to vector<8x1xf32>
    %351 = arith.divf %349, %350 : vector<8x1xf32>
    %cst_103 = arith.constant 9.99999974E-6 : f32
    %352 = vector.broadcast %cst_103 : f32 to vector<8x1xf32>
    %353 = arith.addf %351, %352 : vector<8x1xf32>
    %354 = math.rsqrt %353 : vector<8x1xf32>
    %355 = vector.broadcast %354 : vector<8x1xf32> to vector<8x32xf32>
    %356 = arith.mulf %346, %355 : vector<8x32xf32>
    %357 = vector.broadcast %2 : vector<1x32xf32> to vector<8x32xf32>
    %358 = arith.mulf %356, %357 : vector<8x32xf32>
    %359 = vector.broadcast %3 : vector<1x32xf32> to vector<8x32xf32>
    %360 = arith.addf %358, %359 : vector<8x32xf32>
    %361 = vector.broadcast %4 : vector<1x32xf32> to vector<8x32xf32>
    %362 = arith.mulf %360, %361 : vector<8x32xf32>
    %cst_104 = arith.constant dense<0.000000e+00> : vector<8xf32>
    %363 = vector.multi_reduction <add>, %362, %cst_104 [1] : vector<8x32xf32> to vector<8xf32>
    %364 = vector.shape_cast %363 : vector<8xf32> to vector<8x1xf32>
    %365 = vector.broadcast %5 : vector<1x1xf32> to vector<8x1xf32>
    %366 = arith.addf %364, %365 : vector<8x1xf32>
    %367 = arith.maximumf %322, %366 : vector<8x1xf32>
    %368 = arith.subf %322, %367 : vector<8x1xf32>
    %369 = math.exp %368 : vector<8x1xf32>
    %370 = arith.subf %366, %367 : vector<8x1xf32>
    %371 = math.exp %370 : vector<8x1xf32>
    %372 = arith.mulf %369, %328 : vector<8x1xf32>
    %373 = arith.addf %372, %371 : vector<8x1xf32>
    %374 = vector.broadcast %369 : vector<8x1xf32> to vector<8x32xf32>
    %375 = arith.mulf %374, %333 : vector<8x32xf32>
    %376 = vector.broadcast %371 : vector<8x1xf32> to vector<8x32xf32>
    %377 = arith.mulf %376, %360 : vector<8x32xf32>
    %378 = arith.addf %375, %377 : vector<8x32xf32>
    %c8_i32 = arith.constant 8 : i32
    %379 = tpu.reciprocal %373 : vector<8x1xf32> -> vector<8x1xf32>
    %380 = vector.broadcast %379 : vector<8x1xf32> to vector<8x32xf32>
    %381 = arith.mulf %378, %380 : vector<8x32xf32>
    %c0_105 = arith.constant 0 : index
    %c0_106 = arith.constant 0 : index
    %382 = vector.load %arg9[%c0_105, %c0_106] : memref<32x128xf32, #tpu.memory_space<vmem>>, vector<32x128xf32>
    %cst_107 = arith.constant dense<0.000000e+00> : vector<8x128xf32>
    %383 = tpu.matmul %381, %382, %cst_107 {dimension_numbers = #tpu.dot_dimension_numbers<[1], [0], [0], [1], [0, 0, 1, 1], [], []>} : vector<8x32xf32>, vector<32x128xf32>, vector<8x128xf32> -> vector<8x128xf32>
    %c0_108 = arith.constant 0 : index
    %c0_109 = arith.constant 0 : index
    %384 = vector.load %arg10[%c0_108, %c0_109] : memref<1x128xf32, #tpu.memory_space<vmem>>, vector<1x128xf32>
    %385 = vector.broadcast %384 : vector<1x128xf32> to vector<8x128xf32>
    %386 = arith.addf %383, %385 : vector<8x128xf32>
    %c0_110 = arith.constant 0 : index
    %c0_111 = arith.constant 0 : index
    %387 = vector.load %arg11[%c0_110, %c0_111] : memref<8x128xf32, #tpu.memory_space<vmem>>, vector<8x128xf32>
    tpu.vector_store %arg11[%c0_110, %c0_111], %386 {strides = array<i32>} : memref<8x128xf32, #tpu.memory_space<vmem>>, vector<8x128xf32>,
    return
  }
  func.func @transform_0(%arg0: i32) -> (i32, i32, i32) {
    %c0_i32 = arith.constant 0 : i32
    %c0_i32_0 = arith.constant 0 : i32
    %c0_i32_1 = arith.constant 0 : i32
    return %c0_i32, %arg0, %c0_i32_0 : i32, i32, i32
  }
  func.func @transform_1(%arg0: i32) -> (i32, i32) {
    %c0_i32 = arith.constant 0 : i32
    %c0_i32_0 = arith.constant 0 : i32
    %c0_i32_1 = arith.constant 0 : i32
    return %c0_i32, %c0_i32_0 : i32, i32
  }
  func.func @transform_2(%arg0: i32) -> (i32, i32) {
    %c0_i32 = arith.constant 0 : i32
    %c0_i32_0 = arith.constant 0 : i32
    %c0_i32_1 = arith.constant 0 : i32
    return %c0_i32, %c0_i32_0 : i32, i32
  }
  func.func @transform_3(%arg0: i32) -> (i32, i32) {
    %c0_i32 = arith.constant 0 : i32
    %c0_i32_0 = arith.constant 0 : i32
    %c0_i32_1 = arith.constant 0 : i32
    return %c0_i32, %c0_i32_0 : i32, i32
  }
  func.func @transform_4(%arg0: i32) -> (i32, i32) {
    %c0_i32 = arith.constant 0 : i32
    %c0_i32_0 = arith.constant 0 : i32
    %c0_i32_1 = arith.constant 0 : i32
    return %c0_i32, %c0_i32_0 : i32, i32
  }
  func.func @transform_5(%arg0: i32) -> (i32, i32) {
    %c0_i32 = arith.constant 0 : i32
    %c0_i32_0 = arith.constant 0 : i32
    %c0_i32_1 = arith.constant 0 : i32
    return %c0_i32, %c0_i32_0 : i32, i32
  }
  func.func @transform_6(%arg0: i32) -> (i32, i32) {
    %c0_i32 = arith.constant 0 : i32
    %c0_i32_0 = arith.constant 0 : i32
    %c0_i32_1 = arith.constant 0 : i32
    return %c0_i32, %c0_i32_0 : i32, i32
  }
  func.func @transform_7(%arg0: i32) -> (i32, i32) {
    %c0_i32 = arith.constant 0 : i32
    %c0_i32_0 = arith.constant 0 : i32
    %c0_i32_1 = arith.constant 0 : i32
    return %c0_i32, %c0_i32_0 : i32, i32
  }
  func.func @transform_8(%arg0: i32) -> (i32, i32) {
    %c0_i32 = arith.constant 0 : i32
    %c0_i32_0 = arith.constant 0 : i32
    %c0_i32_1 = arith.constant 0 : i32
    return %c0_i32, %c0_i32_0 : i32, i32
  }
  func.func @transform_9(%arg0: i32) -> (i32, i32) {
    %c0_i32 = arith.constant 0 : i32
    %c0_i32_0 = arith.constant 0 : i32
    %c0_i32_1 = arith.constant 0 : i32
    return %c0_i32, %c0_i32_0 : i32, i32
  }
  func.func @transform_10(%arg0: i32) -> (i32, i32) {
    %c0_i32 = arith.constant 0 : i32
    %c0_i32_0 = arith.constant 0 : i32
    return %arg0, %c0_i32 : i32, i32
  }
}

</mosaic_0001>

<llo_original>
// kernel: tpu_custom_call.1
$region0: #{tpu_custom_call.1}
  #allocation0 [shape = 'u32[]', space=smem, size = 0x4, offset = 0x4, fixed_abs, tag = 'smem constant byte address 0x4 - core index']
  #allocation1 [shape = 'u32[144,128]{1,0:T(1,128)}', space=vmem, size = 0x12000, scoped, tag = 'internal scratch']
  #allocation2 [shape = 'f32[8,8,32]{2,1,0:T(8,128)}', space=vmem, size = 0x8000, scoped, tag = 'scratch operand']
  #allocation3 [shape = 'f32[1,1]{1,0:T(1,128)S(1)}', space=vmem, size = 0x200, scoped, tag = 'scoped memory for tpu_custom_call.1']
  %s0 = inlined_call_operand.vmem [shape: f32[8,16,8], index: 0, kind: input, shape index: {}]
  %s1 = inlined_call_operand.vmem [shape: f32[8,32], index: 1, kind: input, shape index: {}]
  %s2 = inlined_call_operand.vmem [shape: f32[32,32], index: 2, kind: input, shape index: {}]
  %s3 = inlined_call_operand.vmem [shape: f32[1,32], index: 3, kind: input, shape index: {}]
  %s4 = inlined_call_operand.vmem [shape: f32[1,32], index: 4, kind: input, shape index: {}]
  %s5 = inlined_call_operand.vmem [shape: f32[1,32], index: 5, kind: input, shape index: {}]
  %s6 = inlined_call_operand.vmem [shape: f32[1,32], index: 6, kind: input, shape index: {}]
  %s7 = inlined_call_operand.<no memory space> [shape: f32[1,1], index: 7, kind: input, shape index: {}]
  %s8 = inlined_call_operand.vmem [shape: f32[32,128], index: 8, kind: input, shape index: {}]
  %s9 = inlined_call_operand.vmem [shape: f32[1,128], index: 9, kind: input, shape index: {}]
  %s10 = inlined_call_operand.hbm [shape: f32[16,128], index: 10, kind: output, shape index: {}]
  %s11 = sld [smem:[#allocation0]]
  $region111: #{tpu_custom_call.1} parent=0
    _
  %s13 = ssub.s32 1, %s11
  %s14 = scalar_select 0, %s13, %s11
  %v15 = vstv %s7
  %16 = vst [vmem:[#allocation3] sm:$0x1] %v15
  $region1: #{tpu_custom_call.1} parent=0
    #allocation4 [shape = 'u8[65536]{0}', space=vmem, size = 0x10000, scoped, tag = 'input window, operand 0']
    #allocation5 [shape = 'u8[8192]{0}', space=vmem, size = 0x2000, scoped, tag = 'output window, operand 0']
    #allocation6 [shape = 's32[2]{0}', space=sflag, size = 0x8, scoped, tag = 'scoped memory for tpu_custom_call.1']
    %17 = vsyncpa [#allocation6], 0
    %s18 = scalar_lea.sflag [#allocation6], 1
    %19 = vsyncpa %s18, 0
    loop: start=0, step=1, limit=4
    $region2: #{tpu_custom_call.1} parent=1 // loop_pre_header
      _
    $region3: #{tpu_custom_call.1} parent=1 // loop_header
      %s21 = sphi 0, %s25
      %p22 = scmp.ge.s32.totalorder %s21, 4
      %s31 = sphi 0, %s33
      %s34 = sphi 0, %s31
      %s35 = sphi 0, %s34
      %s51 = sphi 0, %s35
      %s55 = sphi 0, %s55
      %s57 = sphi 0, %s55
      %s58 = sphi 0, %s57
      %s72 = sphi 0, %s58
      %s76 = sphi 0, %s76
      %s78 = sphi 0, %s76
      %s79 = sphi 0, %s78
      %s93 = sphi 0, %s79
      %s97 = sphi 0, %s97
      %s99 = sphi 0, %s97
      %s100 = sphi 0, %s99
      %s114 = sphi 0, %s100
      %s118 = sphi 0, %s118
      %s120 = sphi 0, %s118
      %s121 = sphi 0, %s120
      %s135 = sphi 0, %s121
      %s139 = sphi 0, %s139
      %s141 = sphi 0, %s139
      %s142 = sphi 0, %s141
      %s156 = sphi 0, %s142
      %s160 = sphi 0, %s160
      %s162 = sphi 0, %s160
      %s163 = sphi 0, %s162
      %s177 = sphi 0, %s163
      %s181 = sphi 0, %s181
      %s183 = sphi 0, %s181
      %s184 = sphi 0, %s183
      %s198 = sphi 0, %s184
      %s202 = sphi 0, %s202
      %s204 = sphi 0, %s202
      %s205 = sphi 0, %s204
      %s219 = sphi 0, %s205
      %s223 = sphi 0, %s223
      %s225 = sphi 0, %s223
      %s226 = sphi 0, %s225
      %s240 = sphi 0, %s226
      %s246 = sphi 0, %s248
      %s249 = sphi 0, %s246
      %s250 = sphi 0, %s249
      %s266 = sphi 0, %s250
    $region4: #{tpu_custom_call.1} parent=1 // loop_header_branch
      %24 = sbr.rel (%p22) target = $region8
    $region5: #{tpu_custom_call.1} parent=1 // loop_body
      %s26 = ssub.s32 %s21, 1
      %s27 = ssub.s32 %s21, 2
      %s28 = sadd.s32 %s21, 1
      %s29 = ssub.s32 %s21, %s28
      %p30 = scmp.eq.s32.totalorder %s29, 0
      %s32 = sadd.s32 %s31, 1
      %s33 = scalar_select %p30, %s31, %s32
      %p36 = pneg %p30
      %p37 = scmp.eq.s32.totalorder %s21, 1
      %p38 = por %p36, %p37
      %p39 = scmp.ne.s32.totalorder %s31, %s34
      %p40 = scmp.eq.s32.totalorder %s21, 0
      %p41 = por %p39, %p40
      %p42 = scmp.ne.s32.totalorder %s31, %s34
      %p43 = scmp.eq.s32.totalorder %s26, 1
      %p44 = por %p42, %p43
      %p45 = scmp.ne.s32.totalorder %s34, %s35
      %p46 = scmp.eq.s32.totalorder %s26, 0
      %p47 = por %p45, %p46
      %p48 = scmp.ne.s32.totalorder %s34, %s35
      %p49 = scmp.eq.s32.totalorder %s27, 1
      %p50 = por %p48, %p49
      %p52 = scmp.ne.s32.totalorder %s35, %s51
      %p53 = scmp.eq.s32.totalorder %s27, 0
      %p54 = por %p52, %p53
      %s56 = sadd.s32 %s55, 1
      %p59 = scmp.eq.s32.totalorder %s21, 1
      %p60 = scmp.ne.s32.totalorder %s55, %s57
      %p61 = scmp.eq.s32.totalorder %s21, 0
      %p62 = por %p60, %p61
      %p63 = scmp.ne.s32.totalorder %s55, %s57
      %p64 = scmp.eq.s32.totalorder %s26, 1
      %p65 = por %p63, %p64
      %p66 = scmp.ne.s32.totalorder %s57, %s58
      %p67 = scmp.eq.s32.totalorder %s26, 0
      %p68 = por %p66, %p67
      %p69 = scmp.ne.s32.totalorder %s57, %s58
      %p70 = scmp.eq.s32.totalorder %s27, 1
      %p71 = por %p69, %p70
      %p73 = scmp.ne.s32.totalorder %s58, %s72
      %p74 = scmp.eq.s32.totalorder %s27, 0
      %p75 = por %p73, %p74
      %s77 = sadd.s32 %s76, 1
      %p80 = scmp.eq.s32.totalorder %s21, 1
      %p81 = scmp.ne.s32.totalorder %s76, %s78
      %p82 = scmp.eq.s32.totalorder %s21, 0
      %p83 = por %p81, %p82
      %p84 = scmp.ne.s32.totalorder %s76, %s78
      %p85 = scmp.eq.s32.totalorder %s26, 1
      %p86 = por %p84, %p85
      %p87 = scmp.ne.s32.totalorder %s78, %s79
      %p88 = scmp.eq.s32.totalorder %s26, 0
      %p89 = por %p87, %p88
      %p90 = scmp.ne.s32.totalorder %s78, %s79
      %p91 = scmp.eq.s32.totalorder %s27, 1
      %p92 = por %p90, %p91
      %p94 = scmp.ne.s32.totalorder %s79, %s93
      %p95 = scmp.eq.s32.totalorder %s27, 0
      %p96 = por %p94, %p95
      %s98 = sadd.s32 %s97, 1
      %p101 = scmp.eq.s32.totalorder %s21, 1
      %p102 = scmp.ne.s32.totalorder %s97, %s99
      %p103 = scmp.eq.s32.totalorder %s21, 0
      %p104 = por %p102, %p103
      %p105 = scmp.ne.s32.totalorder %s97, %s99
      %p106 = scmp.eq.s32.totalorder %s26, 1
      %p107 = por %p105, %p106
      %p108 = scmp.ne.s32.totalorder %s99, %s100
      %p109 = scmp.eq.s32.totalorder %s26, 0
      %p110 = por %p108, %p109
      %p111 = scmp.ne.s32.totalorder %s99, %s100
      %p112 = scmp.eq.s32.totalorder %s27, 1
      %p113 = por %p111, %p112
      %p115 = scmp.ne.s32.totalorder %s100, %s114
      %p116 = scmp.eq.s32.totalorder %s27, 0
      %p117 = por %p115, %p116
      %s119 = sadd.s32 %s118, 1
      %p122 = scmp.eq.s32.totalorder %s21, 1
      %p123 = scmp.ne.s32.totalorder %s118, %s120
      %p124 = scmp.eq.s32.totalorder %s21, 0
      %p125 = por %p123, %p124
      %p126 = scmp.ne.s32.totalorder %s118, %s120
      %p127 = scmp.eq.s32.totalorder %s26, 1
      %p128 = por %p126, %p127
      %p129 = scmp.ne.s32.totalorder %s120, %s121
      %p130 = scmp.eq.s32.totalorder %s26, 0
      %p131 = por %p129, %p130
      %p132 = scmp.ne.s32.totalorder %s120, %s121
      %p133 = scmp.eq.s32.totalorder %s27, 1
      %p134 = por %p132, %p133
      %p136 = scmp.ne.s32.totalorder %s121, %s135
      %p137 = scmp.eq.s32.totalorder %s27, 0
      %p138 = por %p136, %p137
      %s140 = sadd.s32 %s139, 1
      %p143 = scmp.eq.s32.totalorder %s21, 1
      %p144 = scmp.ne.s32.totalorder %s139, %s141
      %p145 = scmp.eq.s32.totalorder %s21, 0
      %p146 = por %p144, %p145
      %p147 = scmp.ne.s32.totalorder %s139, %s141
      %p148 = scmp.eq.s32.totalorder %s26, 1
      %p149 = por %p147, %p148
      %p150 = scmp.ne.s32.totalorder %s141, %s142
      %p151 = scmp.eq.s32.totalorder %s26, 0
      %p152 = por %p150, %p151
      %p153 = scmp.ne.s32.totalorder %s141, %s142
      %p154 = scmp.eq.s32.totalorder %s27, 1
      %p155 = por %p153, %p154
      %p157 = scmp.ne.s32.totalorder %s142, %s156
      %p158 = scmp.eq.s32.totalorder %s27, 0
      %p159 = por %p157, %p158
      %s161 = sadd.s32 %s160, 1
      %p164 = scmp.eq.s32.totalorder %s21, 1
      %p165 = scmp.ne.s32.totalorder %s160, %s162
      %p166 = scmp.eq.s32.totalorder %s21, 0
      %p167 = por %p165, %p166
      %p168 = scmp.ne.s32.totalorder %s160, %s162
      %p169 = scmp.eq.s32.totalorder %s26, 1
      %p170 = por %p168, %p169
      %p171 = scmp.ne.s32.totalorder %s162, %s163
      %p172 = scmp.eq.s32.totalorder %s26, 0
      %p173 = por %p171, %p172
      %p174 = scmp.ne.s32.totalorder %s162, %s163
      %p175 = scmp.eq.s32.totalorder %s27, 1
      %p176 = por %p174, %p175
      %p178 = scmp.ne.s32.totalorder %s163, %s177
      %p179 = scmp.eq.s32.totalorder %s27, 0
      %p180 = por %p178, %p179
      %s182 = sadd.s32 %s181, 1
      %p185 = scmp.eq.s32.totalorder %s21, 1
      %p186 = scmp.ne.s32.totalorder %s181, %s183
      %p187 = scmp.eq.s32.totalorder %s21, 0
      %p188 = por %p186, %p187
      %p189 = scmp.ne.s32.totalorder %s181, %s183
      %p190 = scmp.eq.s32.totalorder %s26, 1
      %p191 = por %p189, %p190
      %p192 = scmp.ne.s32.totalorder %s183, %s184
      %p193 = scmp.eq.s32.totalorder %s26, 0
      %p194 = por %p192, %p193
      %p195 = scmp.ne.s32.totalorder %s183, %s184
      %p196 = scmp.eq.s32.totalorder %s27, 1
      %p197 = por %p195, %p196
      %p199 = scmp.ne.s32.totalorder %s184, %s198
      %p200 = scmp.eq.s32.totalorder %s27, 0
      %p201 = por %p199, %p200
      %s203 = sadd.s32 %s202, 1
      %p206 = scmp.eq.s32.totalorder %s21, 1
      %p207 = scmp.ne.s32.totalorder %s202, %s204
      %p208 = scmp.eq.s32.totalorder %s21, 0
      %p209 = por %p207, %p208
      %p210 = scmp.ne.s32.totalorder %s202, %s204
      %p211 = scmp.eq.s32.totalorder %s26, 1
      %p212 = por %p210, %p211
      %p213 = scmp.ne.s32.totalorder %s204, %s205
      %p214 = scmp.eq.s32.totalorder %s26, 0
      %p215 = por %p213, %p214
      %p216 = scmp.ne.s32.totalorder %s204, %s205
      %p217 = scmp.eq.s32.totalorder %s27, 1
      %p218 = por %p216, %p217
      %p220 = scmp.ne.s32.totalorder %s205, %s219
      %p221 = scmp.eq.s32.totalorder %s27, 0
      %p222 = por %p220, %p221
      %s224 = sadd.s32 %s223, 1
      %p227 = scmp.eq.s32.totalorder %s21, 1
      %p228 = scmp.ne.s32.totalorder %s223, %s225
      %p229 = scmp.eq.s32.totalorder %s21, 0
      %p230 = por %p228, %p229
      %p231 = scmp.ne.s32.totalorder %s223, %s225
      %p232 = scmp.eq.s32.totalorder %s26, 1
      %p233 = por %p231, %p232
      %p234 = scmp.ne.s32.totalorder %s225, %s226
      %p235 = scmp.eq.s32.totalorder %s26, 0
      %p236 = por %p234, %p235
      %p237 = scmp.ne.s32.totalorder %s225, %s226
      %p238 = scmp.eq.s32.totalorder %s27, 1
      %p239 = por %p237, %p238
      %p241 = scmp.ne.s32.totalorder %s226, %s240
      %p242 = scmp.eq.s32.totalorder %s27, 0
      %p243 = por %p241, %p242
      %s244 = ssub.s32 %s21, %s28
      %p245 = scmp.eq.s32.totalorder %s244, 0
      %s247 = sadd.s32 %s246, 1
      %s248 = scalar_select %p245, %s246, %s247
      %p251 = pneg %p245
      %p252 = scmp.eq.s32.totalorder %s21, 1
      %p253 = por %p251, %p252
      %p254 = scmp.ne.s32.totalorder %s246, %s249
      %p255 = scmp.eq.s32.totalorder %s21, 0
      %p256 = por %p254, %p255
      %p257 = scmp.ne.s32.totalorder %s246, %s249
      %p258 = scmp.eq.s32.totalorder %s26, 1
      %p259 = por %p257, %p258
      %p260 = scmp.ne.s32.totalorder %s249, %s250
      %p261 = scmp.eq.s32.totalorder %s26, 0
      %p262 = por %p260, %p261
      %p263 = scmp.ne.s32.totalorder %s249, %s250
      %p264 = scmp.eq.s32.totalorder %s27, 1
      %p265 = por %p263, %p264
      %p267 = scmp.ne.s32.totalorder %s250, %s266
      %p268 = scmp.eq.s32.totalorder %s27, 0
      %p269 = por %p267, %p268
      %p270 = scmp.le.s32.totalorder 1, %s21
      %p271 = scmp.lt.s32.totalorder %s21, 3
      %p272 = pnand %p270, %p271
      %p273 = pneg %p272
      // Predicated region
      $region9: #{tpu_custom_call.1} parent=5 // pred_check
        _
      $region10: #{tpu_custom_call.1} parent=5 // pred_check_branch
        %275 = sbr.rel (%p272) target = $region12
      $region11: #{tpu_custom_call.1} parent=5 // pred_region
        %s276 = ssub.s32 %s21, 1
        // Predicated region
        $region13: #{tpu_custom_call.1} parent=11 // pred_check
          %p277 = pneg %p68
        $region14: #{tpu_custom_call.1} parent=11 // pred_check_branch
          %279 = sbr.rel (%p277) target = $region16
        $region15: #{tpu_custom_call.1} parent=11 // pred_region
          _
        $region16: #{tpu_custom_call.1} parent=11 // pred_fallthru
          _
        // Predicated region
        $region17: #{tpu_custom_call.1} parent=11 // pred_check
          %p280 = pneg %p89
        $region18: #{tpu_custom_call.1} parent=11 // pred_check_branch
          %282 = sbr.rel (%p280) target = $region20
        $region19: #{tpu_custom_call.1} parent=11 // pred_region
          _
        $region20: #{tpu_custom_call.1} parent=11 // pred_fallthru
          _
        // Predicated region
        $region21: #{tpu_custom_call.1} parent=11 // pred_check
          %p283 = pneg %p110
        $region22: #{tpu_custom_call.1} parent=11 // pred_check_branch
          %285 = sbr.rel (%p283) target = $region24
        $region23: #{tpu_custom_call.1} parent=11 // pred_region
          _
        $region24: #{tpu_custom_call.1} parent=11 // pred_fallthru
          _
        // Predicated region
        $region25: #{tpu_custom_call.1} parent=11 // pred_check
          %p286 = pneg %p131
        $region26: #{tpu_custom_call.1} parent=11 // pred_check_branch
          %288 = sbr.rel (%p286) target = $region28
        $region27: #{tpu_custom_call.1} parent=11 // pred_region
          _
        $region28: #{tpu_custom_call.1} parent=11 // pred_fallthru
          _
        // Predicated region
        $region29: #{tpu_custom_call.1} parent=11 // pred_check
          %p289 = pneg %p152
        $region30: #{tpu_custom_call.1} parent=11 // pred_check_branch
          %291 = sbr.rel (%p289) target = $region32
        $region31: #{tpu_custom_call.1} parent=11 // pred_region
          _
        $region32: #{tpu_custom_call.1} parent=11 // pred_fallthru
          _
        // Predicated region
        $region33: #{tpu_custom_call.1} parent=11 // pred_check
          %p292 = pneg %p173
        $region34: #{tpu_custom_call.1} parent=11 // pred_check_branch
          %294 = sbr.rel (%p292) target = $region36
        $region35: #{tpu_custom_call.1} parent=11 // pred_region
          _
        $region36: #{tpu_custom_call.1} parent=11 // pred_fallthru
          _
        // Predicated region
        $region37: #{tpu_custom_call.1} parent=11 // pred_check
          %p295 = pneg %p194
        $region38: #{tpu_custom_call.1} parent=11 // pred_check_branch
          %297 = sbr.rel (%p295) target = $region40
        $region39: #{tpu_custom_call.1} parent=11 // pred_region
          _
        $region40: #{tpu_custom_call.1} parent=11 // pred_fallthru
          _
        // Predicated region
        $region41: #{tpu_custom_call.1} parent=11 // pred_check
          %p298 = pneg %p215
        $region42: #{tpu_custom_call.1} parent=11 // pred_check_branch
          %300 = sbr.rel (%p298) target = $region44
        $region43: #{tpu_custom_call.1} parent=11 // pred_region
          _
        $region44: #{tpu_custom_call.1} parent=11 // pred_fallthru
          _
        // Predicated region
        $region45: #{tpu_custom_call.1} parent=11 // pred_check
          %p301 = pneg %p236
        $region46: #{tpu_custom_call.1} parent=11 // pred_check_branch
          %303 = sbr.rel (%p301) target = $region48
        $region47: #{tpu_custom_call.1} parent=11 // pred_region
          _
        $region48: #{tpu_custom_call.1} parent=11 // pred_fallthru
          _
      $region12: #{tpu_custom_call.1} parent=5 // pred_fallthru
        _
      %p304 = scmp.lt.s32.totalorder %s21, 2
      // Predicated region
      $region49: #{tpu_custom_call.1} parent=5 // pred_check
        %p305 = pneg %p304
      $region50: #{tpu_custom_call.1} parent=5 // pred_check_branch
        %307 = sbr.rel (%p305) target = $region52
      $region51: #{tpu_custom_call.1} parent=5 // pred_region
        // Predicated region
        $region53: #{tpu_custom_call.1} parent=51 // pred_check
          %p308 = pneg %p41
        $region54: #{tpu_custom_call.1} parent=51 // pred_check_branch
          %310 = sbr.rel (%p308) target = $region56
        $region55: #{tpu_custom_call.1} parent=51 // pred_region
          %s311 = sand.u32 %s31, 1
          %s312 = sand.u32 %s31, 1
          %s313 = smul.addr %s312, 64
          %s314 = scalar_lea.vmem [#allocation4], %s313
          %s315 = smul.addr %s21, 8
          %s316 = scalar_lea.vmem %s0, %s315
          // Predicated region
          $region57: #{tpu_custom_call.1} parent=55 // pred_check
            _
          $region58: #{tpu_custom_call.1} parent=55 // pred_check_branch
            %318 = sbr.rel (0) target = $region60
          $region59: #{tpu_custom_call.1} parent=55 // pred_region
            // Predicated region
            $region61: #{tpu_custom_call.1} parent=59 // pred_check
              _
            $region62: #{tpu_custom_call.1} parent=59 // pred_check_branch
              %320 = sbr.rel (0) target = $region64
            $region63: #{tpu_custom_call.1} parent=59 // pred_region
              // Predicated region
              $region76: #{tpu_custom_call.1} parent=63 // pred_check
                _
              $region77: #{tpu_custom_call.1} parent=63 // pred_check_branch
                %349 = sbr.rel (0) target = $region79
              $region78: #{tpu_custom_call.1} parent=63 // pred_region
                loop: start=0, step=1, limit=1
                $region80: #{tpu_custom_call.1} parent=78 // loop_pre_header
                  _
                $region81: #{tpu_custom_call.1} parent=78 // loop_header
                  %s351 = sphi 0, %s355
                  %p352 = scmp.ge.s32.totalorder %s351, 1
                  %s356 = sphi %s316, %s316
                  %s357 = sphi %s314, %s314
                $region82: #{tpu_custom_call.1} parent=78 // loop_header_branch
                  %354 = sbr.rel (%p352) target = $region86
                $region83: #{tpu_custom_call.1} parent=78 // loop_body
                  %v358 = vld [vmem:[%s356] sm:$0xff]
                  %359 = vst [vmem:[%s357] sm:$0xff] %v358
                  %v360 = vld [vmem:[%s356 + $0x10] sm:$0xff]
                  %361 = vst [vmem:[%s357 + $0x8] sm:$0xff] %v360
                  %v362 = vld [vmem:[%s356 + $0x20] sm:$0xff]
                  %363 = vst [vmem:[%s357 + $0x10] sm:$0xff] %v362
                  %v364 = vld [vmem:[%s356 + $0x30] sm:$0xff]
                  %365 = vst [vmem:[%s357 + $0x18] sm:$0xff] %v364
                  %v366 = vld [vmem:[%s356 + $0x40] sm:$0xff]
                  %367 = vst [vmem:[%s357 + $0x20] sm:$0xff] %v366
                  %v368 = vld [vmem:[%s356 + $0x50] sm:$0xff]
                  %369 = vst [vmem:[%s357 + $0x28] sm:$0xff] %v368
                  %v370 = vld [vmem:[%s356 + $0x60] sm:$0xff]
                  %371 = vst [vmem:[%s357 + $0x30] sm:$0xff] %v370
                  %v372 = vld [vmem:[%s356 + $0x70] sm:$0xff]
                  %373 = vst [vmem:[%s357 + $0x38] sm:$0xff] %v372
                $region84: #{tpu_custom_call.1} parent=78 // loop_footer
                  %s355 = sadd.s32 1, %s351
                $region85: #{tpu_custom_call.1} parent=78 // loop_footer_branch
                  %350 = sbr.rel target = $region81
                $region86: #{tpu_custom_call.1} parent=78 // loop_exit
                  _
              $region79: #{tpu_custom_call.1} parent=63 // pred_fallthru
                _
              // Predicated region
              $region87: #{tpu_custom_call.1} parent=63 // pred_check
                _
              $region88: #{tpu_custom_call.1} parent=63 // pred_check_branch
                %375 = sbr.rel target = $region90
              $region89: #{tpu_custom_call.1} parent=63 // pred_region
                _
              $region90: #{tpu_custom_call.1} parent=63 // pred_fallthru
                _
            $region64: #{tpu_custom_call.1} parent=59 // pred_fallthru
              _
            // Predicated region
            $region65: #{tpu_custom_call.1} parent=59 // pred_check
              _
            $region66: #{tpu_custom_call.1} parent=59 // pred_check_branch
              %322 = sbr.rel target = $region68
            $region67: #{tpu_custom_call.1} parent=59 // pred_region
              loop: start=0, step=1, limit=1
              $region69: #{tpu_custom_call.1} parent=67 // loop_pre_header
                _
              $region70: #{tpu_custom_call.1} parent=67 // loop_header
                %s325 = sphi 0, %s329
                %p326 = scmp.ge.s32.totalorder %s325, 1
                %s330 = sphi %s316, %s316
                %s331 = sphi %s314, %s314
              $region71: #{tpu_custom_call.1} parent=67 // loop_header_branch
                %328 = sbr.rel (%p326) target = $region75
              $region72: #{tpu_custom_call.1} parent=67 // loop_body
                %v332 = vld [vmem:[%s330] sm:$0xff]
                %333 = vst [vmem:[%s331] sm:$0xff] %v332
                %v334 = vld [vmem:[%s330 + $0x10] sm:$0xff]
                %335 = vst [vmem:[%s331 + $0x8] sm:$0xff] %v334
                %v336 = vld [vmem:[%s330 + $0x20] sm:$0xff]
                %337 = vst [vmem:[%s331 + $0x10] sm:$0xff] %v336
                %v338 = vld [vmem:[%s330 + $0x30] sm:$0xff]
                %339 = vst [vmem:[%s331 + $0x18] sm:$0xff] %v338
                %v340 = vld [vmem:[%s330 + $0x40] sm:$0xff]
                %341 = vst [vmem:[%s331 + $0x20] sm:$0xff] %v340
                %v342 = vld [vmem:[%s330 + $0x50] sm:$0xff]
                %343 = vst [vmem:[%s331 + $0x28] sm:$0xff] %v342
                %v344 = vld [vmem:[%s330 + $0x60] sm:$0xff]
                %345 = vst [vmem:[%s331 + $0x30] sm:$0xff] %v344
                %v346 = vld [vmem:[%s330 + $0x70] sm:$0xff]
                %347 = vst [vmem:[%s331 + $0x38] sm:$0xff] %v346
              $region73: #{tpu_custom_call.1} parent=67 // loop_footer
                %s329 = sadd.s32 1, %s325
              $region74: #{tpu_custom_call.1} parent=67 // loop_footer_branch
                %324 = sbr.rel target = $region70
              $region75: #{tpu_custom_call.1} parent=67 // loop_exit
                _
            $region68: #{tpu_custom_call.1} parent=59 // pred_fallthru
              _
          $region60: #{tpu_custom_call.1} parent=55 // pred_fallthru
            _
          %376 = vnop
        $region56: #{tpu_custom_call.1} parent=51 // pred_fallthru
          _
      $region52: #{tpu_custom_call.1} parent=5 // pred_fallthru
        _
      %p377 = scmp.le.s32.totalorder 1, %s21
      %p378 = scmp.lt.s32.totalorder %s21, 3
      %p379 = pnand %p377, %p378
      %p380 = pneg %p379
      // Predicated region
      $region91: #{tpu_custom_call.1} parent=5 // pred_check
        _
      $region92: #{tpu_custom_call.1} parent=5 // pred_check_branch
        %382 = sbr.rel (%p379) target = $region94
      $region93: #{tpu_custom_call.1} parent=5 // pred_region
        %s383 = ssub.s32 %s21, 1
        %s384 = sand.u32 %s34, 1
        %s385 = sand.u32 %s34, 1
        %s386 = smul.addr %s385, 64
        %s387 = scalar_lea.vmem [#allocation4], %s386
        // Predicated region
        $region95: #{tpu_custom_call.1} parent=93 // pred_check
          %p388 = pneg %p47
        $region96: #{tpu_custom_call.1} parent=93 // pred_check_branch
          %390 = sbr.rel (%p388) target = $region98
        $region97: #{tpu_custom_call.1} parent=93 // pred_region
          _
        $region98: #{tpu_custom_call.1} parent=93 // pred_fallthru
          _
        %s391 = sand.u32 %s34, 1
        %s392 = sand.u32 %s34, 1
        %s393 = smul.addr %s392, 64
        %s394 = scalar_lea.vmem [#allocation4], %s393
        %p395 = pneg %p47
        %p396 = pneg %p44
        %p397 = pneg %p68
        %p398 = pneg %p65
        %p399 = pneg %p89
        %p400 = pneg %p86
        %p401 = pneg %p110
        %p402 = pneg %p107
        %p403 = pneg %p131
        %p404 = pneg %p128
        %p405 = pneg %p152
        %p406 = pneg %p149
        %p407 = pneg %p173
        %p408 = pneg %p170
        %p409 = pneg %p194
        %p410 = pneg %p191
        %p411 = pneg %p215
        %p412 = pneg %p212
        %p413 = pneg %p236
        %p414 = pneg %p233
        %p415 = pneg %p262
        %p416 = pneg %p259
        %s417 = sand.u32 %s249, 1
        %s418 = scalar_lea.sflag [#allocation6], %s417
        %s419 = sand.u32 %s249, 1
        %s420 = smul.addr %s419, 8
        %s421 = scalar_lea.vmem [#allocation5], %s420
        %v422 = vld [vmem:[%s1] sm:$0xff]
        %v423 = vld [vmem:[%s2] sm:$0xff]
        %v424 = vld [vmem:[%s2 + $0x8] sm:$0xff]
        %v425 = vld [vmem:[%s2 + $0x10] sm:$0xff]
        %v426 = vld [vmem:[%s2 + $0x18] sm:$0xff]
        %v427 = vld [vmem:[%s4] sm:$0x1]
        %v428 = vld [vmem:[%s5] sm:$0x1]
        %v429 = vld [vmem:[%s6] sm:$0x1]
        %v430 = vld [vmem:[#allocation3] sm:$0x1]
        %v431 = vld [vmem:[%s387] sm:$0xff]
        %v432 = vld [vmem:[%s387 + $0x8] sm:$0xff]
        %v433 = vld [vmem:[%s387 + $0x10] sm:$0xff]
        %v434 = vld [vmem:[%s387 + $0x18] sm:$0xff]
        %v435 = vld [vmem:[%s387 + $0x20] sm:$0xff]
        %v436 = vld [vmem:[%s387 + $0x28] sm:$0xff]
        %v437 = vld [vmem:[%s387 + $0x30] sm:$0xff]
        %v438 = vld [vmem:[%s387 + $0x38] sm:$0xff]
        %v439 = vld [vmem:[%s3] sm:$0x1]
        %v441 = vlaneseq
        %v442 = vshrl.u32 %v441, 7
        %v443 = vsub.s32 0, %v442
        %v444 = vrot.slane %v439, %v443
        %vm446 = vcmask 64512
        %v448 = vsel %vm446, %v431, 0
        %v451 = vsel %vm446, %v432, 0
        %v454 = vsel %vm446, %v433, 0
        %v457 = vsel %vm446, %v434, 0
        %v460 = vsel %vm446, %v435, 0
        %v463 = vsel %vm446, %v436, 0
        %v466 = vsel %vm446, %v437, 0
        %v469 = vsel %vm446, %v438, 0
        %471 = vmatprep.subr.mxu0 0.0
        %472 = vmatpush1.msra.mxu0 %v422
        %473 = vmatprep.subr.mxu0 0.0
        %474 = vmatpush1.msra.mxu0 0.0
        %475 = vmatprep.subr.mxu0 0.0
        %476 = vmatpush1.msra.mxu0 0.0
        %477 = vmatprep.subr.mxu0 0.0
        %478 = vmatpush1.msra.mxu0 0.0
        %479 = vmatprep.subr.mxu0 0.0
        %480 = vmatpush1.msra.mxu0 0.0
        %481 = vmatprep.subr.mxu0 0.0
        %482 = vmatpush1.msra.mxu0 0.0
        %483 = vmatprep.subr.mxu0 0.0
        %484 = vmatpush1.msra.mxu0 0.0
        %485 = vmatprep.subr.mxu0 0.0
        %486 = vmatpush1.msra.mxu0 0.0
        %487 = vmatprep.subr.mxu0 0.0
        %488 = vmatpush1.msra.mxu0 0.0
        %489 = vmatprep.subr.mxu0 0.0
        %490 = vmatpush1.msra.mxu0 0.0
        %491 = vmatprep.subr.mxu0 0.0
        %492 = vmatpush1.msra.mxu0 0.0
        %493 = vmatprep.subr.mxu0 0.0
        %494 = vmatpush1.msra.mxu0 0.0
        %495 = vmatprep.subr.mxu0 0.0
        %496 = vmatpush1.msra.mxu0 0.0
        %497 = vmatprep.subr.mxu0 0.0
        %498 = vmatpush1.msra.mxu0 0.0
        %499 = vmatprep.subr.mxu0 0.0
        %500 = vmatpush1.msra.mxu0 0.0
        %501 = vmatprep.subr.mxu0 0.0
        %502 = vmatpush1.msra.mxu0 0.0
        %503 = vmatprep.subr.mxu0 0.0
        %504 = vmatpush1.msra.mxu0 0.0
        %505 = vmatprep.subr.mxu0 0.0
        %506 = vmatpush1.msra.mxu0 0.0
        %507 = vmatprep.subr.mxu0 0.0
        %508 = vmatpush1.msra.mxu0 0.0
        %509 = vmatprep.subr.mxu0 0.0
        %510 = vmatpush1.msra.mxu0 0.0
        %511 = vmatprep.subr.mxu0 0.0
        %512 = vmatpush1.msra.mxu0 0.0
        %513 = vmatprep.subr.mxu0 0.0
        %514 = vmatpush1.msra.mxu0 0.0
        %515 = vmatprep.subr.mxu0 0.0
        %516 = vmatpush1.msra.mxu0 0.0
        %517 = vmatprep.subr.mxu0 0.0
        %518 = vmatpush1.msra.mxu0 0.0
        %519 = vmatprep.subr.mxu0 0.0
        %520 = vmatpush1.msra.mxu0 0.0
        %521 = vmatprep.subr.mxu0 0.0
        %522 = vmatpush1.msra.mxu0 0.0
        %523 = vmatprep.subr.mxu0 0.0
        %524 = vmatpush1.msra.mxu0 0.0
        %525 = vmatprep.subr.mxu0 0.0
        %526 = vmatpush1.msra.mxu0 0.0
        %527 = vmatprep.subr.mxu0 0.0
        %528 = vmatpush1.msra.mxu0 0.0
        %529 = vmatprep.subr.mxu0 0.0
        %530 = vmatpush1.msra.mxu0 0.0
        %531 = vmatprep.subr.mxu0 0.0
        %532 = vmatpush1.msra.mxu0 0.0
        %533 = vmatprep.subr.mxu0 0.0
        %534 = vmatpush1.msra.mxu0 0.0
        %535 = vmatprep.mubr.f32.mxu0 0.0
        %536 = vmatmul.mubr.f32.gmra.mrb[0].mxu0 %v448
        %v537 = vpop.f32.mrb[0].mxu0
        %v538 = vadd.f32 %v444, %v537
        %v539 = vpop.f32.mrb[0].mxu0
        %540 = vmatprep.mubr.f32.mxu0 0.0
        %541 = vmatmul.mubr.f32.gmra.mrb[0].mxu0 %v451
        %v542 = vpop.f32.mrb[0].mxu0
        %v543 = vadd.f32 %v444, %v542
        %v544 = vpop.f32.mrb[0].mxu0
        %545 = vmatprep.mubr.f32.mxu0 0.0
        %546 = vmatmul.mubr.f32.gmra.mrb[0].mxu0 %v454
        %v547 = vpop.f32.mrb[0].mxu0
        %v548 = vadd.f32 %v444, %v547
        %v549 = vpop.f32.mrb[0].mxu0
        %550 = vmatprep.mubr.f32.mxu0 0.0
        %551 = vmatmul.mubr.f32.gmra.mrb[0].mxu0 %v457
        %v552 = vpop.f32.mrb[0].mxu0
        %v553 = vadd.f32 %v444, %v552
        %v554 = vpop.f32.mrb[0].mxu0
        %555 = vmatprep.mubr.f32.mxu0 0.0
        %556 = vmatmul.mubr.f32.gmra.mrb[0].mxu0 %v460
        %v557 = vpop.f32.mrb[0].mxu0
        %v558 = vadd.f32 %v444, %v557
        %v559 = vpop.f32.mrb[0].mxu0
        %560 = vmatprep.mubr.f32.mxu0 0.0
        %561 = vmatmul.mubr.f32.gmra.mrb[0].mxu0 %v463
        %v562 = vpop.f32.mrb[0].mxu0
        %v563 = vadd.f32 %v444, %v562
        %v564 = vpop.f32.mrb[0].mxu0
        %565 = vmatprep.mubr.f32.mxu0 0.0
        %566 = vmatmul.mubr.f32.gmra.mrb[0].mxu0 %v466
        %v567 = vpop.f32.mrb[0].mxu0
        %v568 = vadd.f32 %v444, %v567
        %v569 = vpop.f32.mrb[0].mxu0
        %570 = vmatprep.mubr.f32.mxu0 0.0
        %571 = vmatmul.mubr.f32.gmra.mrb[0].mxu0 %v469
        %v572 = vpop.f32.mrb[0].mxu0
        %v573 = vadd.f32 %v444, %v572
        %v574 = vpop.f32.mrb[0].mxu0
        %575 = vdwg.mxu0
        %vm576 = vcmask 261120
        %577 = vst.msk [vmem:[#allocation2] sm:$0xff] %vm576, %v538
        %578 = vst.msk [vmem:[#allocation2 + $0x8] sm:$0xff] %vm576, %v543
        %579 = vst.msk [vmem:[#allocation2 + $0x10] sm:$0xff] %vm576, %v548
        %580 = vst.msk [vmem:[#allocation2 + $0x18] sm:$0xff] %vm576, %v553
        %581 = vst.msk [vmem:[#allocation2 + $0x20] sm:$0xff] %vm576, %v558
        %582 = vst.msk [vmem:[#allocation2 + $0x28] sm:$0xff] %vm576, %v563
        %583 = vst.msk [vmem:[#allocation2 + $0x30] sm:$0xff] %vm576, %v568
        %584 = vst.msk [vmem:[#allocation2 + $0x38] sm:$0xff] %vm576, %v573
        %v585 = vld [vmem:[#allocation2] sm:$0xff]
        %v587 = vsel %vm576, %v585, 0
        %589 = vmatprep.subr.mxu0 0.0
        %590 = vmatpush1.msra.mxu0 %v423
        %591 = vmatprep.subr.mxu0 0.0
        %592 = vmatpush1.msra.mxu0 %v424
        %593 = vmatprep.subr.mxu0 0.0
        %594 = vmatpush1.msra.mxu0 %v425
        %595 = vmatprep.subr.mxu0 0.0
        %596 = vmatpush1.msra.mxu0 %v426
        %597 = vmatprep.subr.mxu0 0.0
        %598 = vmatpush1.msra.mxu0 0.0
        %599 = vmatprep.subr.mxu0 0.0
        %600 = vmatpush1.msra.mxu0 0.0
        %601 = vmatprep.subr.mxu0 0.0
        %602 = vmatpush1.msra.mxu0 0.0
        %603 = vmatprep.subr.mxu0 0.0
        %604 = vmatpush1.msra.mxu0 0.0
        %605 = vmatprep.subr.mxu0 0.0
        %606 = vmatpush1.msra.mxu0 0.0
        %607 = vmatprep.subr.mxu0 0.0
        %608 = vmatpush1.msra.mxu0 0.0
        %609 = vmatprep.subr.mxu0 0.0
        %610 = vmatpush1.msra.mxu0 0.0
        %611 = vmatprep.subr.mxu0 0.0
        %612 = vmatpush1.msra.mxu0 0.0
        %613 = vmatprep.subr.mxu0 0.0
        %614 = vmatpush1.msra.mxu0 0.0
        %615 = vmatprep.subr.mxu0 0.0
        %616 = vmatpush1.msra.mxu0 0.0
        %617 = vmatprep.subr.mxu0 0.0
        %618 = vmatpush1.msra.mxu0 0.0
        %619 = vmatprep.subr.mxu0 0.0
        %620 = vmatpush1.msra.mxu0 0.0
        %621 = vmatprep.subr.mxu0 0.0
        %622 = vmatpush1.msra.mxu0 0.0
        %623 = vmatprep.subr.mxu0 0.0
        %624 = vmatpush1.msra.mxu0 0.0
        %625 = vmatprep.subr.mxu0 0.0
        %626 = vmatpush1.msra.mxu0 0.0
        %627 = vmatprep.subr.mxu0 0.0
        %628 = vmatpush1.msra.mxu0 0.0
        %629 = vmatprep.subr.mxu0 0.0
        %630 = vmatpush1.msra.mxu0 0.0
        %631 = vmatprep.subr.mxu0 0.0
        %632 = vmatpush1.msra.mxu0 0.0
        %633 = vmatprep.subr.mxu0 0.0
        %634 = vmatpush1.msra.mxu0 0.0
        %635 = vmatprep.subr.mxu0 0.0
        %636 = vmatpush1.msra.mxu0 0.0
        %637 = vmatprep.subr.mxu0 0.0
        %638 = vmatpush1.msra.mxu0 0.0
        %639 = vmatprep.subr.mxu0 0.0
        %640 = vmatpush1.msra.mxu0 0.0
        %641 = vmatprep.subr.mxu0 0.0
        %642 = vmatpush1.msra.mxu0 0.0
        %643 = vmatprep.subr.mxu0 0.0
        %644 = vmatpush1.msra.mxu0 0.0
        %645 = vmatprep.subr.mxu0 0.0
        %646 = vmatpush1.msra.mxu0 0.0
        %647 = vmatprep.subr.mxu0 0.0
        %648 = vmatpush1.msra.mxu0 0.0
        %649 = vmatprep.subr.mxu0 0.0
        %650 = vmatpush1.msra.mxu0 0.0
        %651 = vmatprep.subr.mxu0 0.0
        %652 = vmatpush1.msra.mxu0 0.0
        %653 = vmatprep.mubr.f32.mxu0 0.0
        %654 = vmatmul.mubr.f32.gmra.mrb[0].mxu0 %v587
        %v655 = vpop.f32.mrb[0].mxu0
        %v656 = vadd.f32 0.0, %v655
        %v657 = vpop.f32.mrb[0].mxu0
        %658 = vdwg.mxu0
        %v659 = vadd.f32 %v585, %v656
        %v660 = vmax.f32 %v659, 0.0
        %v661 = vsel %vm576, %v660, 0.0
        %662 = vadd.xlane.f32.xlu0 %v661
        %v663 = vpop.xlane.xlu0 %662
        %v664 = vrcp.pop 32.0
        %v665 = vmul.f32 %v663, %v664
        %v666 = vsub.f32 %v660, %v665
        %v667 = vmul.f32 %v666, %v666
        %v668 = vsel %vm576, %v667, 0.0
        %669 = vadd.xlane.f32.xlu0 %v668
        %v670 = vpop.xlane.xlu0 %669
        %v671 = vmul.f32 %v670, %v664
        %v672 = vadd.f32 %v671, 1e-05
        %v673 = vrsqrt.pop %v672
        %v674 = vmul.f32 %v666, %v673
        %v676 = vlaneseq
        %v677 = vshrl.u32 %v676, 7
        %v678 = vsub.s32 0, %v677
        %v679 = vrot.slane %v427, %v678
        %v681 = vmul.f32 %v674, %v679
        %v683 = vlaneseq
        %v684 = vshrl.u32 %v683, 7
        %v685 = vsub.s32 0, %v684
        %v686 = vrot.slane %v428, %v685
        %v688 = vadd.f32 %v681, %v686
        %v690 = vlaneseq
        %v691 = vshrl.u32 %v690, 7
        %v692 = vsub.s32 0, %v691
        %v693 = vrot.slane %v429, %v692
        %v695 = vmul.f32 %v688, %v693
        %v696 = vsel %vm576, %v695, 0.0
        %697 = vadd.xlane.f32.xlu0 %v696
        %v698 = vpop.xlane.xlu0 %697
        %v700 = vlaneseq
        %v701 = vshrl.u32 %v700, 7
        %v702 = vsub.s32 0, %v701
        %v703 = vrot.slane %v430, %v702
        %v705 = vadd.f32 %v698, %v703
        %v706 = vsub.f32 -inf, %v705
        %v707 = vmul.f32 %v706, 1.442695
        %v708 = vpow.pop %v707
        %v709 = vsub.f32 %v705, %v705
        %v710 = vmul.f32 %v709, 1.442695
        %v711 = vpow.pop %v710
        %v712 = vmul.f32 %v708, 0.0
        %v713 = vadd.f32 %v712, %v711
        %715 = vset.pattern.permute.xlu0 0
        %716 = vperm.xlu0 %715, %v708
        %v717 = vpop.permute.xlu0 %716
        %v719 = vmul.f32 %v717, 0.0
        %721 = vset.pattern.permute.xlu0 0
        %722 = vperm.xlu0 %721, %v711
        %v723 = vpop.permute.xlu0 %722
        %v725 = vmul.f32 %v723, %v688
        %v726 = vadd.f32 %v719, %v725
        %s727 = scalar_lea.vmem [#allocation2], 8
        %v728 = vld [vmem:[%s727] sm:$0xff]
        %v730 = vsel %vm576, %v660, 0
        %732 = vmatprep.subr.mxu0 0.0
        %733 = vmatpush1.msra.mxu0 %v423
        %734 = vmatprep.subr.mxu0 0.0
        %735 = vmatpush1.msra.mxu0 %v424
        %736 = vmatprep.subr.mxu0 0.0
        %737 = vmatpush1.msra.mxu0 %v425
        %738 = vmatprep.subr.mxu0 0.0
        %739 = vmatpush1.msra.mxu0 %v426
        %740 = vmatprep.subr.mxu0 0.0
        %741 = vmatpush1.msra.mxu0 0.0
        %742 = vmatprep.subr.mxu0 0.0
        %743 = vmatpush1.msra.mxu0 0.0
        %744 = vmatprep.subr.mxu0 0.0
        %745 = vmatpush1.msra.mxu0 0.0
        %746 = vmatprep.subr.mxu0 0.0
        %747 = vmatpush1.msra.mxu0 0.0
        %748 = vmatprep.subr.mxu0 0.0
        %749 = vmatpush1.msra.mxu0 0.0
        %750 = vmatprep.subr.mxu0 0.0
        %751 = vmatpush1.msra.mxu0 0.0
        %752 = vmatprep.subr.mxu0 0.0
        %753 = vmatpush1.msra.mxu0 0.0
        %754 = vmatprep.subr.mxu0 0.0
        %755 = vmatpush1.msra.mxu0 0.0
        %756 = vmatprep.subr.mxu0 0.0
        %757 = vmatpush1.msra.mxu0 0.0
        %758 = vmatprep.subr.mxu0 0.0
        %759 = vmatpush1.msra.mxu0 0.0
        %760 = vmatprep.subr.mxu0 0.0
        %761 = vmatpush1.msra.mxu0 0.0
        %762 = vmatprep.subr.mxu0 0.0
        %763 = vmatpush1.msra.mxu0 0.0
        %764 = vmatprep.subr.mxu0 0.0
        %765 = vmatpush1.msra.mxu0 0.0
        %766 = vmatprep.subr.mxu0 0.0
        %767 = vmatpush1.msra.mxu0 0.0
        %768 = vmatprep.subr.mxu0 0.0
        %769 = vmatpush1.msra.mxu0 0.0
        %770 = vmatprep.subr.mxu0 0.0
        %771 = vmatpush1.msra.mxu0 0.0
        %772 = vmatprep.subr.mxu0 0.0
        %773 = vmatpush1.msra.mxu0 0.0
        %774 = vmatprep.subr.mxu0 0.0
        %775 = vmatpush1.msra.mxu0 0.0
        %776 = vmatprep.subr.mxu0 0.0
        %777 = vmatpush1.msra.mxu0 0.0
        %778 = vmatprep.subr.mxu0 0.0
        %779 = vmatpush1.msra.mxu0 0.0
        %780 = vmatprep.subr.mxu0 0.0
        %781 = vmatpush1.msra.mxu0 0.0
        %782 = vmatprep.subr.mxu0 0.0
        %783 = vmatpush1.msra.mxu0 0.0
        %784 = vmatprep.subr.mxu0 0.0
        %785 = vmatpush1.msra.mxu0 0.0
        %786 = vmatprep.subr.mxu0 0.0
        %787 = vmatpush1.msra.mxu0 0.0
        %788 = vmatprep.subr.mxu0 0.0
        %789 = vmatpush1.msra.mxu0 0.0
        %790 = vmatprep.subr.mxu0 0.0
        %791 = vmatpush1.msra.mxu0 0.0
        %792 = vmatprep.subr.mxu0 0.0
        %793 = vmatpush1.msra.mxu0 0.0
        %794 = vmatprep.subr.mxu0 0.0
        %795 = vmatpush1.msra.mxu0 0.0
        %796 = vmatprep.mubr.f32.mxu0 0.0
        %797 = vmatmul.mubr.f32.gmra.mrb[0].mxu0 %v730
        %v798 = vpop.f32.mrb[0].mxu0
        %v799 = vadd.f32 0.0, %v798
        %v800 = vpop.f32.mrb[0].mxu0
        %801 = vdwg.mxu0
        %v802 = vadd.f32 %v728, %v799
        %v803 = vmax.f32 %v802, 0.0
        %v804 = vsel %vm576, %v803, 0.0
        %805 = vadd.xlane.f32.xlu0 %v804
        %v806 = vpop.xlane.xlu0 %805
        %v807 = vmul.f32 %v806, %v664
        %v808 = vsub.f32 %v803, %v807
        %v809 = vmul.f32 %v808, %v808
        %v810 = vsel %vm576, %v809, 0.0
        %811 = vadd.xlane.f32.xlu0 %v810
        %v812 = vpop.xlane.xlu0 %811
        %v813 = vmul.f32 %v812, %v664
        %v814 = vadd.f32 %v813, 1e-05
        %v815 = vrsqrt.pop %v814
        %v816 = vmul.f32 %v808, %v815
        %v817 = vmul.f32 %v816, %v679
        %v818 = vadd.f32 %v817, %v686
        %v819 = vmul.f32 %v818, %v693
        %v820 = vsel %vm576, %v819, 0.0
        %821 = vadd.xlane.f32.xlu0 %v820
        %v822 = vpop.xlane.xlu0 %821
        %v823 = vadd.f32 %v822, %v703
        %v824 = vmax.f32 %v705, %v823
        %v825 = vsub.f32 %v705, %v824
        %v826 = vmul.f32 %v825, 1.442695
        %v827 = vpow.pop %v826
        %v828 = vsub.f32 %v823, %v824
        %v829 = vmul.f32 %v828, 1.442695
        %v830 = vpow.pop %v829
        %v831 = vmul.f32 %v827, %v713
        %v832 = vadd.f32 %v831, %v830
        %834 = vset.pattern.permute.xlu0 0
        %835 = vperm.xlu0 %834, %v827
        %v836 = vpop.permute.xlu0 %835
        %v838 = vmul.f32 %v836, %v726
        %840 = vset.pattern.permute.xlu0 0
        %841 = vperm.xlu0 %840, %v830
        %v842 = vpop.permute.xlu0 %841
        %v844 = vmul.f32 %v842, %v818
        %v845 = vadd.f32 %v838, %v844
        %s846 = scalar_lea.vmem [#allocation2], 16
        %v847 = vld [vmem:[%s846] sm:$0xff]
        %v849 = vsel %vm576, %v803, 0
        %851 = vmatprep.subr.mxu0 0.0
        %852 = vmatpush1.msra.mxu0 %v423
        %853 = vmatprep.subr.mxu0 0.0
        %854 = vmatpush1.msra.mxu0 %v424
        %855 = vmatprep.subr.mxu0 0.0
        %856 = vmatpush1.msra.mxu0 %v425
        %857 = vmatprep.subr.mxu0 0.0
        %858 = vmatpush1.msra.mxu0 %v426
        %859 = vmatprep.subr.mxu0 0.0
        %860 = vmatpush1.msra.mxu0 0.0
        %861 = vmatprep.subr.mxu0 0.0
        %862 = vmatpush1.msra.mxu0 0.0
        %863 = vmatprep.subr.mxu0 0.0
        %864 = vmatpush1.msra.mxu0 0.0
        %865 = vmatprep.subr.mxu0 0.0
        %866 = vmatpush1.msra.mxu0 0.0
        %867 = vmatprep.subr.mxu0 0.0
        %868 = vmatpush1.msra.mxu0 0.0
        %869 = vmatprep.subr.mxu0 0.0
        %870 = vmatpush1.msra.mxu0 0.0
        %871 = vmatprep.subr.mxu0 0.0
        %872 = vmatpush1.msra.mxu0 0.0
        %873 = vmatprep.subr.mxu0 0.0
        %874 = vmatpush1.msra.mxu0 0.0
        %875 = vmatprep.subr.mxu0 0.0
        %876 = vmatpush1.msra.mxu0 0.0
        %877 = vmatprep.subr.mxu0 0.0
        %878 = vmatpush1.msra.mxu0 0.0
        %879 = vmatprep.subr.mxu0 0.0
        %880 = vmatpush1.msra.mxu0 0.0
        %881 = vmatprep.subr.mxu0 0.0
        %882 = vmatpush1.msra.mxu0 0.0
        %883 = vmatprep.subr.mxu0 0.0
        %884 = vmatpush1.msra.mxu0 0.0
        %885 = vmatprep.subr.mxu0 0.0
        %886 = vmatpush1.msra.mxu0 0.0
        %887 = vmatprep.subr.mxu0 0.0
        %888 = vmatpush1.msra.mxu0 0.0
        %889 = vmatprep.subr.mxu0 0.0
        %890 = vmatpush1.msra.mxu0 0.0
        %891 = vmatprep.subr.mxu0 0.0
        %892 = vmatpush1.msra.mxu0 0.0
        %893 = vmatprep.subr.mxu0 0.0
        %894 = vmatpush1.msra.mxu0 0.0
        %895 = vmatprep.subr.mxu0 0.0
        %896 = vmatpush1.msra.mxu0 0.0
        %897 = vmatprep.subr.mxu0 0.0
        %898 = vmatpush1.msra.mxu0 0.0
        %899 = vmatprep.subr.mxu0 0.0
        %900 = vmatpush1.msra.mxu0 0.0
        %901 = vmatprep.subr.mxu0 0.0
        %902 = vmatpush1.msra.mxu0 0.0
        %903 = vmatprep.subr.mxu0 0.0
        %904 = vmatpush1.msra.mxu0 0.0
        %905 = vmatprep.subr.mxu0 0.0
        %906 = vmatpush1.msra.mxu0 0.0
        %907 = vmatprep.subr.mxu0 0.0
        %908 = vmatpush1.msra.mxu0 0.0
        %909 = vmatprep.subr.mxu0 0.0
        %910 = vmatpush1.msra.mxu0 0.0
        %911 = vmatprep.subr.mxu0 0.0
        %912 = vmatpush1.msra.mxu0 0.0
        %913 = vmatprep.subr.mxu0 0.0
        %914 = vmatpush1.msra.mxu0 0.0
        %915 = vmatprep.mubr.f32.mxu0 0.0
        %916 = vmatmul.mubr.f32.gmra.mrb[0].mxu0 %v849
        %v917 = vpop.f32.mrb[0].mxu0
        %v918 = vadd.f32 0.0, %v917
        %v919 = vpop.f32.mrb[0].mxu0
        %920 = vdwg.mxu0
        %v921 = vadd.f32 %v847, %v918
        %v922 = vmax.f32 %v921, 0.0
        %v923 = vsel %vm576, %v922, 0.0
        %924 = vadd.xlane.f32.xlu0 %v923
        %v925 = vpop.xlane.xlu0 %924
        %v926 = vmul.f32 %v925, %v664
        %v927 = vsub.f32 %v922, %v926
        %v928 = vmul.f32 %v927, %v927
        %v929 = vsel %vm576, %v928, 0.0
        %930 = vadd.xlane.f32.xlu0 %v929
        %v931 = vpop.xlane.xlu0 %930
        %v932 = vmul.f32 %v931, %v664
        %v933 = vadd.f32 %v932, 1e-05
        %v934 = vrsqrt.pop %v933
        %v935 = vmul.f32 %v927, %v934
        %v936 = vmul.f32 %v935, %v679
        %v937 = vadd.f32 %v936, %v686
        %v938 = vmul.f32 %v937, %v693
        %v939 = vsel %vm576, %v938, 0.0
        %940 = vadd.xlane.f32.xlu0 %v939
        %v941 = vpop.xlane.xlu0 %940
        %v942 = vadd.f32 %v941, %v703
        %v943 = vmax.f32 %v824, %v942
        %v944 = vsub.f32 %v824, %v943
        %v945 = vmul.f32 %v944, 1.442695
        %v946 = vpow.pop %v945
        %v947 = vsub.f32 %v942, %v943
        %v948 = vmul.f32 %v947, 1.442695
        %v949 = vpow.pop %v948
        %v950 = vmul.f32 %v946, %v832
        %v951 = vadd.f32 %v950, %v949
        %953 = vset.pattern.permute.xlu0 0
        %954 = vperm.xlu0 %953, %v946
        %v955 = vpop.permute.xlu0 %954
        %v957 = vmul.f32 %v955, %v845
        %959 = vset.pattern.permute.xlu0 0
        %960 = vperm.xlu0 %959, %v949
        %v961 = vpop.permute.xlu0 %960
        %v963 = vmul.f32 %v961, %v937
        %v964 = vadd.f32 %v957, %v963
        %s965 = scalar_lea.vmem [#allocation2], 24
        %v966 = vld [vmem:[%s965] sm:$0xff]
        %v968 = vsel %vm576, %v922, 0
        %970 = vmatprep.subr.mxu0 0.0
        %971 = vmatpush1.msra.mxu0 %v423
        %972 = vmatprep.subr.mxu0 0.0
        %973 = vmatpush1.msra.mxu0 %v424
        %974 = vmatprep.subr.mxu0 0.0
        %975 = vmatpush1.msra.mxu0 %v425
        %976 = vmatprep.subr.mxu0 0.0
        %977 = vmatpush1.msra.mxu0 %v426
        %978 = vmatprep.subr.mxu0 0.0
        %979 = vmatpush1.msra.mxu0 0.0
        %980 = vmatprep.subr.mxu0 0.0
        %981 = vmatpush1.msra.mxu0 0.0
        %982 = vmatprep.subr.mxu0 0.0
        %983 = vmatpush1.msra.mxu0 0.0
        %984 = vmatprep.subr.mxu0 0.0
        %985 = vmatpush1.msra.mxu0 0.0
        %986 = vmatprep.subr.mxu0 0.0
        %987 = vmatpush1.msra.mxu0 0.0
        %988 = vmatprep.subr.mxu0 0.0
        %989 = vmatpush1.msra.mxu0 0.0
        %990 = vmatprep.subr.mxu0 0.0
        %991 = vmatpush1.msra.mxu0 0.0
        %992 = vmatprep.subr.mxu0 0.0
        %993 = vmatpush1.msra.mxu0 0.0
        %994 = vmatprep.subr.mxu0 0.0
        %995 = vmatpush1.msra.mxu0 0.0
        %996 = vmatprep.subr.mxu0 0.0
        %997 = vmatpush1.msra.mxu0 0.0
        %998 = vmatprep.subr.mxu0 0.0
        %999 = vmatpush1.msra.mxu0 0.0
        %1000 = vmatprep.subr.mxu0 0.0
        %1001 = vmatpush1.msra.mxu0 0.0
        %1002 = vmatprep.subr.mxu0 0.0
        %1003 = vmatpush1.msra.mxu0 0.0
        %1004 = vmatprep.subr.mxu0 0.0
        %1005 = vmatpush1.msra.mxu0 0.0
        %1006 = vmatprep.subr.mxu0 0.0
        %1007 = vmatpush1.msra.mxu0 0.0
        %1008 = vmatprep.subr.mxu0 0.0
        %1009 = vmatpush1.msra.mxu0 0.0
        %1010 = vmatprep.subr.mxu0 0.0
        %1011 = vmatpush1.msra.mxu0 0.0
        %1012 = vmatprep.subr.mxu0 0.0
        %1013 = vmatpush1.msra.mxu0 0.0
        %1014 = vmatprep.subr.mxu0 0.0
        %1015 = vmatpush1.msra.mxu0 0.0
        %1016 = vmatprep.subr.mxu0 0.0
        %1017 = vmatpush1.msra.mxu0 0.0
        %1018 = vmatprep.subr.mxu0 0.0
        %1019 = vmatpush1.msra.mxu0 0.0
        %1020 = vmatprep.subr.mxu0 0.0
        %1021 = vmatpush1.msra.mxu0 0.0
        %1022 = vmatprep.subr.mxu0 0.0
        %1023 = vmatpush1.msra.mxu0 0.0
        %1024 = vmatprep.subr.mxu0 0.0
        %1025 = vmatpush1.msra.mxu0 0.0
        %1026 = vmatprep.subr.mxu0 0.0
        %1027 = vmatpush1.msra.mxu0 0.0
        %1028 = vmatprep.subr.mxu0 0.0
        %1029 = vmatpush1.msra.mxu0 0.0
        %1030 = vmatprep.subr.mxu0 0.0
        %1031 = vmatpush1.msra.mxu0 0.0
        %1032 = vmatprep.subr.mxu0 0.0
        %1033 = vmatpush1.msra.mxu0 0.0
        %1034 = vmatprep.mubr.f32.mxu0 0.0
        %1035 = vmatmul.mubr.f32.gmra.mrb[0].mxu0 %v968
        %v1036 = vpop.f32.mrb[0].mxu0
        %v1037 = vadd.f32 0.0, %v1036
        %v1038 = vpop.f32.mrb[0].mxu0
        %1039 = vdwg.mxu0
        %v1040 = vadd.f32 %v966, %v1037
        %v1041 = vmax.f32 %v1040, 0.0
        %v1042 = vsel %vm576, %v1041, 0.0
        %1043 = vadd.xlane.f32.xlu0 %v1042
        %v1044 = vpop.xlane.xlu0 %1043
        %v1045 = vmul.f32 %v1044, %v664
        %v1046 = vsub.f32 %v1041, %v1045
        %v1047 = vmul.f32 %v1046, %v1046
        %v1048 = vsel %vm576, %v1047, 0.0
        %1049 = vadd.xlane.f32.xlu0 %v1048
        %v1050 = vpop.xlane.xlu0 %1049
        %v1051 = vmul.f32 %v1050, %v664
        %v1052 = vadd.f32 %v1051, 1e-05
        %v1053 = vrsqrt.pop %v1052
        %v1054 = vmul.f32 %v1046, %v1053
        %v1055 = vmul.f32 %v1054, %v679
        %v1056 = vadd.f32 %v1055, %v686
        %v1057 = vmul.f32 %v1056, %v693
        %v1058 = vsel %vm576, %v1057, 0.0
        %1059 = vadd.xlane.f32.xlu0 %v1058
        %v1060 = vpop.xlane.xlu0 %1059
        %v1061 = vadd.f32 %v1060, %v703
        %v1062 = vmax.f32 %v943, %v1061
        %v1063 = vsub.f32 %v943, %v1062
        %v1064 = vmul.f32 %v1063, 1.442695
        %v1065 = vpow.pop %v1064
        %v1066 = vsub.f32 %v1061, %v1062
        %v1067 = vmul.f32 %v1066, 1.442695
        %v1068 = vpow.pop %v1067
        %v1069 = vmul.f32 %v1065, %v951
        %v1070 = vadd.f32 %v1069, %v1068
        %1072 = vset.pattern.permute.xlu0 0
        %1073 = vperm.xlu0 %1072, %v1065
        %v1074 = vpop.permute.xlu0 %1073
        %v1076 = vmul.f32 %v1074, %v964
        %1078 = vset.pattern.permute.xlu0 0
        %1079 = vperm.xlu0 %1078, %v1068
        %v1080 = vpop.permute.xlu0 %1079
        %v1082 = vmul.f32 %v1080, %v1056
        %v1083 = vadd.f32 %v1076, %v1082
        %s1084 = scalar_lea.vmem [#allocation2], 32
        %v1085 = vld [vmem:[%s1084] sm:$0xff]
        %v1087 = vsel %vm576, %v1041, 0
        %1089 = vmatprep.subr.mxu0 0.0
        %1090 = vmatpush1.msra.mxu0 %v423
        %1091 = vmatprep.subr.mxu0 0.0
        %1092 = vmatpush1.msra.mxu0 %v424
        %1093 = vmatprep.subr.mxu0 0.0
        %1094 = vmatpush1.msra.mxu0 %v425
        %1095 = vmatprep.subr.mxu0 0.0
        %1096 = vmatpush1.msra.mxu0 %v426
        %1097 = vmatprep.subr.mxu0 0.0
        %1098 = vmatpush1.msra.mxu0 0.0
        %1099 = vmatprep.subr.mxu0 0.0
        %1100 = vmatpush1.msra.mxu0 0.0
        %1101 = vmatprep.subr.mxu0 0.0
        %1102 = vmatpush1.msra.mxu0 0.0
        %1103 = vmatprep.subr.mxu0 0.0
        %1104 = vmatpush1.msra.mxu0 0.0
        %1105 = vmatprep.subr.mxu0 0.0
        %1106 = vmatpush1.msra.mxu0 0.0
        %1107 = vmatprep.subr.mxu0 0.0
        %1108 = vmatpush1.msra.mxu0 0.0
        %1109 = vmatprep.subr.mxu0 0.0
        %1110 = vmatpush1.msra.mxu0 0.0
        %1111 = vmatprep.subr.mxu0 0.0
        %1112 = vmatpush1.msra.mxu0 0.0
        %1113 = vmatprep.subr.mxu0 0.0
        %1114 = vmatpush1.msra.mxu0 0.0
        %1115 = vmatprep.subr.mxu0 0.0
        %1116 = vmatpush1.msra.mxu0 0.0
        %1117 = vmatprep.subr.mxu0 0.0
        %1118 = vmatpush1.msra.mxu0 0.0
        %1119 = vmatprep.subr.mxu0 0.0
        %1120 = vmatpush1.msra.mxu0 0.0
        %1121 = vmatprep.subr.mxu0 0.0
        %1122 = vmatpush1.msra.mxu0 0.0
        %1123 = vmatprep.subr.mxu0 0.0
        %1124 = vmatpush1.msra.mxu0 0.0
        %1125 = vmatprep.subr.mxu0 0.0
        %1126 = vmatpush1.msra.mxu0 0.0
        %1127 = vmatprep.subr.mxu0 0.0
        %1128 = vmatpush1.msra.mxu0 0.0
        %1129 = vmatprep.subr.mxu0 0.0
        %1130 = vmatpush1.msra.mxu0 0.0
        %1131 = vmatprep.subr.mxu0 0.0
        %1132 = vmatpush1.msra.mxu0 0.0
        %1133 = vmatprep.subr.mxu0 0.0
        %1134 = vmatpush1.msra.mxu0 0.0
        %1135 = vmatprep.subr.mxu0 0.0
        %1136 = vmatpush1.msra.mxu0 0.0
        %1137 = vmatprep.subr.mxu0 0.0
        %1138 = vmatpush1.msra.mxu0 0.0
        %1139 = vmatprep.subr.mxu0 0.0
        %1140 = vmatpush1.msra.mxu0 0.0
        %1141 = vmatprep.subr.mxu0 0.0
        %1142 = vmatpush1.msra.mxu0 0.0
        %1143 = vmatprep.subr.mxu0 0.0
        %1144 = vmatpush1.msra.mxu0 0.0
        %1145 = vmatprep.subr.mxu0 0.0
        %1146 = vmatpush1.msra.mxu0 0.0
        %1147 = vmatprep.subr.mxu0 0.0
        %1148 = vmatpush1.msra.mxu0 0.0
        %1149 = vmatprep.subr.mxu0 0.0
        %1150 = vmatpush1.msra.mxu0 0.0
        %1151 = vmatprep.subr.mxu0 0.0
        %1152 = vmatpush1.msra.mxu0 0.0
        %1153 = vmatprep.mubr.f32.mxu0 0.0
        %1154 = vmatmul.mubr.f32.gmra.mrb[0].mxu0 %v1087
        %v1155 = vpop.f32.mrb[0].mxu0
        %v1156 = vadd.f32 0.0, %v1155
        %v1157 = vpop.f32.mrb[0].mxu0
        %1158 = vdwg.mxu0
        %v1159 = vadd.f32 %v1085, %v1156
        %v1160 = vmax.f32 %v1159, 0.0
        %v1161 = vsel %vm576, %v1160, 0.0
        %1162 = vadd.xlane.f32.xlu0 %v1161
        %v1163 = vpop.xlane.xlu0 %1162
        %v1164 = vmul.f32 %v1163, %v664
        %v1165 = vsub.f32 %v1160, %v1164
        %v1166 = vmul.f32 %v1165, %v1165
        %v1167 = vsel %vm576, %v1166, 0.0
        %1168 = vadd.xlane.f32.xlu0 %v1167
        %v1169 = vpop.xlane.xlu0 %1168
        %v1170 = vmul.f32 %v1169, %v664
        %v1171 = vadd.f32 %v1170, 1e-05
        %v1172 = vrsqrt.pop %v1171
        %v1173 = vmul.f32 %v1165, %v1172
        %v1174 = vmul.f32 %v1173, %v679
        %v1175 = vadd.f32 %v1174, %v686
        %v1176 = vmul.f32 %v1175, %v693
        %v1177 = vsel %vm576, %v1176, 0.0
        %1178 = vadd.xlane.f32.xlu0 %v1177
        %v1179 = vpop.xlane.xlu0 %1178
        %v1180 = vadd.f32 %v1179, %v703
        %v1181 = vmax.f32 %v1062, %v1180
        %v1182 = vsub.f32 %v1062, %v1181
        %v1183 = vmul.f32 %v1182, 1.442695
        %v1184 = vpow.pop %v1183
        %v1185 = vsub.f32 %v1180, %v1181
        %v1186 = vmul.f32 %v1185, 1.442695
        %v1187 = vpow.pop %v1186
        %v1188 = vmul.f32 %v1184, %v1070
        %v1189 = vadd.f32 %v1188, %v1187
        %1191 = vset.pattern.permute.xlu0 0
        %1192 = vperm.xlu0 %1191, %v1184
        %v1193 = vpop.permute.xlu0 %1192
        %v1195 = vmul.f32 %v1193, %v1083
        %1197 = vset.pattern.permute.xlu0 0
        %1198 = vperm.xlu0 %1197, %v1187
        %v1199 = vpop.permute.xlu0 %1198
        %v1201 = vmul.f32 %v1199, %v1175
        %v1202 = vadd.f32 %v1195, %v1201
        %s1203 = scalar_lea.vmem [#allocation2], 40
        %v1204 = vld [vmem:[%s1203] sm:$0xff]
        %v1206 = vsel %vm576, %v1160, 0
        %1208 = vmatprep.subr.mxu0 0.0
        %1209 = vmatpush1.msra.mxu0 %v423
        %1210 = vmatprep.subr.mxu0 0.0
        %1211 = vmatpush1.msra.mxu0 %v424
        %1212 = vmatprep.subr.mxu0 0.0
        %1213 = vmatpush1.msra.mxu0 %v425
        %1214 = vmatprep.subr.mxu0 0.0
        %1215 = vmatpush1.msra.mxu0 %v426
        %1216 = vmatprep.subr.mxu0 0.0
        %1217 = vmatpush1.msra.mxu0 0.0
        %1218 = vmatprep.subr.mxu0 0.0
        %1219 = vmatpush1.msra.mxu0 0.0
        %1220 = vmatprep.subr.mxu0 0.0
        %1221 = vmatpush1.msra.mxu0 0.0
        %1222 = vmatprep.subr.mxu0 0.0
        %1223 = vmatpush1.msra.mxu0 0.0
        %1224 = vmatprep.subr.mxu0 0.0
        %1225 = vmatpush1.msra.mxu0 0.0
        %1226 = vmatprep.subr.mxu0 0.0
        %1227 = vmatpush1.msra.mxu0 0.0
        %1228 = vmatprep.subr.mxu0 0.0
        %1229 = vmatpush1.msra.mxu0 0.0
        %1230 = vmatprep.subr.mxu0 0.0
        %1231 = vmatpush1.msra.mxu0 0.0
        %1232 = vmatprep.subr.mxu0 0.0
        %1233 = vmatpush1.msra.mxu0 0.0
        %1234 = vmatprep.subr.mxu0 0.0
        %1235 = vmatpush1.msra.mxu0 0.0
        %1236 = vmatprep.subr.mxu0 0.0
        %1237 = vmatpush1.msra.mxu0 0.0
        %1238 = vmatprep.subr.mxu0 0.0
        %1239 = vmatpush1.msra.mxu0 0.0
        %1240 = vmatprep.subr.mxu0 0.0
        %1241 = vmatpush1.msra.mxu0 0.0
        %1242 = vmatprep.subr.mxu0 0.0
        %1243 = vmatpush1.msra.mxu0 0.0
        %1244 = vmatprep.subr.mxu0 0.0
        %1245 = vmatpush1.msra.mxu0 0.0
        %1246 = vmatprep.subr.mxu0 0.0
        %1247 = vmatpush1.msra.mxu0 0.0
        %1248 = vmatprep.subr.mxu0 0.0
        %1249 = vmatpush1.msra.mxu0 0.0
        %1250 = vmatprep.subr.mxu0 0.0
        %1251 = vmatpush1.msra.mxu0 0.0
        %1252 = vmatprep.subr.mxu0 0.0
        %1253 = vmatpush1.msra.mxu0 0.0
        %1254 = vmatprep.subr.mxu0 0.0
        %1255 = vmatpush1.msra.mxu0 0.0
        %1256 = vmatprep.subr.mxu0 0.0
        %1257 = vmatpush1.msra.mxu0 0.0
        %1258 = vmatprep.subr.mxu0 0.0
        %1259 = vmatpush1.msra.mxu0 0.0
        %1260 = vmatprep.subr.mxu0 0.0
        %1261 = vmatpush1.msra.mxu0 0.0
        %1262 = vmatprep.subr.mxu0 0.0
        %1263 = vmatpush1.msra.mxu0 0.0
        %1264 = vmatprep.subr.mxu0 0.0
        %1265 = vmatpush1.msra.mxu0 0.0
        %1266 = vmatprep.subr.mxu0 0.0
        %1267 = vmatpush1.msra.mxu0 0.0
        %1268 = vmatprep.subr.mxu0 0.0
        %1269 = vmatpush1.msra.mxu0 0.0
        %1270 = vmatprep.subr.mxu0 0.0
        %1271 = vmatpush1.msra.mxu0 0.0
        %1272 = vmatprep.mubr.f32.mxu0 0.0
        %1273 = vmatmul.mubr.f32.gmra.mrb[0].mxu0 %v1206
        %v1274 = vpop.f32.mrb[0].mxu0
        %v1275 = vadd.f32 0.0, %v1274
        %v1276 = vpop.f32.mrb[0].mxu0
        %1277 = vdwg.mxu0
        %v1278 = vadd.f32 %v1204, %v1275
        %v1279 = vmax.f32 %v1278, 0.0
        %v1280 = vsel %vm576, %v1279, 0.0
        %1281 = vadd.xlane.f32.xlu0 %v1280
        %v1282 = vpop.xlane.xlu0 %1281
        %v1283 = vmul.f32 %v1282, %v664
        %v1284 = vsub.f32 %v1279, %v1283
        %v1285 = vmul.f32 %v1284, %v1284
        %v1286 = vsel %vm576, %v1285, 0.0
        %1287 = vadd.xlane.f32.xlu0 %v1286
        %v1288 = vpop.xlane.xlu0 %1287
        %v1289 = vmul.f32 %v1288, %v664
        %v1290 = vadd.f32 %v1289, 1e-05
        %v1291 = vrsqrt.pop %v1290
        %v1292 = vmul.f32 %v1284, %v1291
        %v1293 = vmul.f32 %v1292, %v679
        %v1294 = vadd.f32 %v1293, %v686
        %v1295 = vmul.f32 %v1294, %v693
        %v1296 = vsel %vm576, %v1295, 0.0
        %1297 = vadd.xlane.f32.xlu0 %v1296
        %v1298 = vpop.xlane.xlu0 %1297
        %v1299 = vadd.f32 %v1298, %v703
        %v1300 = vmax.f32 %v1181, %v1299
        %v1301 = vsub.f32 %v1181, %v1300
        %v1302 = vmul.f32 %v1301, 1.442695
        %v1303 = vpow.pop %v1302
        %v1304 = vsub.f32 %v1299, %v1300
        %v1305 = vmul.f32 %v1304, 1.442695
        %v1306 = vpow.pop %v1305
        %v1307 = vmul.f32 %v1303, %v1189
        %v1308 = vadd.f32 %v1307, %v1306
        %1310 = vset.pattern.permute.xlu0 0
        %1311 = vperm.xlu0 %1310, %v1303
        %v1312 = vpop.permute.xlu0 %1311
        %v1314 = vmul.f32 %v1312, %v1202
        %1316 = vset.pattern.permute.xlu0 0
        %1317 = vperm.xlu0 %1316, %v1306
        %v1318 = vpop.permute.xlu0 %1317
        %v1320 = vmul.f32 %v1318, %v1294
        %v1321 = vadd.f32 %v1314, %v1320
        %s1322 = scalar_lea.vmem [#allocation2], 48
        %v1323 = vld [vmem:[%s1322] sm:$0xff]
        %v1325 = vsel %vm576, %v1279, 0
        %1327 = vmatprep.subr.mxu0 0.0
        %1328 = vmatpush1.msra.mxu0 %v423
        %1329 = vmatprep.subr.mxu0 0.0
        %1330 = vmatpush1.msra.mxu0 %v424
        %1331 = vmatprep.subr.mxu0 0.0
        %1332 = vmatpush1.msra.mxu0 %v425
        %1333 = vmatprep.subr.mxu0 0.0
        %1334 = vmatpush1.msra.mxu0 %v426
        %1335 = vmatprep.subr.mxu0 0.0
        %1336 = vmatpush1.msra.mxu0 0.0
        %1337 = vmatprep.subr.mxu0 0.0
        %1338 = vmatpush1.msra.mxu0 0.0
        %1339 = vmatprep.subr.mxu0 0.0
        %1340 = vmatpush1.msra.mxu0 0.0
        %1341 = vmatprep.subr.mxu0 0.0
        %1342 = vmatpush1.msra.mxu0 0.0
        %1343 = vmatprep.subr.mxu0 0.0
        %1344 = vmatpush1.msra.mxu0 0.0
        %1345 = vmatprep.subr.mxu0 0.0
        %1346 = vmatpush1.msra.mxu0 0.0
        %1347 = vmatprep.subr.mxu0 0.0
        %1348 = vmatpush1.msra.mxu0 0.0
        %1349 = vmatprep.subr.mxu0 0.0
        %1350 = vmatpush1.msra.mxu0 0.0
        %1351 = vmatprep.subr.mxu0 0.0
        %1352 = vmatpush1.msra.mxu0 0.0
        %1353 = vmatprep.subr.mxu0 0.0
        %1354 = vmatpush1.msra.mxu0 0.0
        %1355 = vmatprep.subr.mxu0 0.0
        %1356 = vmatpush1.msra.mxu0 0.0
        %1357 = vmatprep.subr.mxu0 0.0
        %1358 = vmatpush1.msra.mxu0 0.0
        %1359 = vmatprep.subr.mxu0 0.0
        %1360 = vmatpush1.msra.mxu0 0.0
        %1361 = vmatprep.subr.mxu0 0.0
        %1362 = vmatpush1.msra.mxu0 0.0
        %1363 = vmatprep.subr.mxu0 0.0
        %1364 = vmatpush1.msra.mxu0 0.0
        %1365 = vmatprep.subr.mxu0 0.0
        %1366 = vmatpush1.msra.mxu0 0.0
        %1367 = vmatprep.subr.mxu0 0.0
        %1368 = vmatpush1.msra.mxu0 0.0
        %1369 = vmatprep.subr.mxu0 0.0
        %1370 = vmatpush1.msra.mxu0 0.0
        %1371 = vmatprep.subr.mxu0 0.0
        %1372 = vmatpush1.msra.mxu0 0.0
        %1373 = vmatprep.subr.mxu0 0.0
        %1374 = vmatpush1.msra.mxu0 0.0
        %1375 = vmatprep.subr.mxu0 0.0
        %1376 = vmatpush1.msra.mxu0 0.0
        %1377 = vmatprep.subr.mxu0 0.0
        %1378 = vmatpush1.msra.mxu0 0.0
        %1379 = vmatprep.subr.mxu0 0.0
        %1380 = vmatpush1.msra.mxu0 0.0
        %1381 = vmatprep.subr.mxu0 0.0
        %1382 = vmatpush1.msra.mxu0 0.0
        %1383 = vmatprep.subr.mxu0 0.0
        %1384 = vmatpush1.msra.mxu0 0.0
        %1385 = vmatprep.subr.mxu0 0.0
        %1386 = vmatpush1.msra.mxu0 0.0
        %1387 = vmatprep.subr.mxu0 0.0
        %1388 = vmatpush1.msra.mxu0 0.0
        %1389 = vmatprep.subr.mxu0 0.0
        %1390 = vmatpush1.msra.mxu0 0.0
        %1391 = vmatprep.mubr.f32.mxu0 0.0
        %1392 = vmatmul.mubr.f32.gmra.mrb[0].mxu0 %v1325
        %v1393 = vpop.f32.mrb[0].mxu0
        %v1394 = vadd.f32 0.0, %v1393
        %v1395 = vpop.f32.mrb[0].mxu0
        %1396 = vdwg.mxu0
        %v1397 = vadd.f32 %v1323, %v1394
        %v1398 = vmax.f32 %v1397, 0.0
        %v1399 = vsel %vm576, %v1398, 0.0
        %1400 = vadd.xlane.f32.xlu0 %v1399
        %v1401 = vpop.xlane.xlu0 %1400
        %v1402 = vmul.f32 %v1401, %v664
        %v1403 = vsub.f32 %v1398, %v1402
        %v1404 = vmul.f32 %v1403, %v1403
        %v1405 = vsel %vm576, %v1404, 0.0
        %1406 = vadd.xlane.f32.xlu0 %v1405
        %v1407 = vpop.xlane.xlu0 %1406
        %v1408 = vmul.f32 %v1407, %v664
        %v1409 = vadd.f32 %v1408, 1e-05
        %v1410 = vrsqrt.pop %v1409
        %v1411 = vmul.f32 %v1403, %v1410
        %v1412 = vmul.f32 %v1411, %v679
        %v1413 = vadd.f32 %v1412, %v686
        %v1414 = vmul.f32 %v1413, %v693
        %v1415 = vsel %vm576, %v1414, 0.0
        %1416 = vadd.xlane.f32.xlu0 %v1415
        %v1417 = vpop.xlane.xlu0 %1416
        %v1418 = vadd.f32 %v1417, %v703
        %v1419 = vmax.f32 %v1300, %v1418
        %v1420 = vsub.f32 %v1300, %v1419
        %v1421 = vmul.f32 %v1420, 1.442695
        %v1422 = vpow.pop %v1421
        %v1423 = vsub.f32 %v1418, %v1419
        %v1424 = vmul.f32 %v1423, 1.442695
        %v1425 = vpow.pop %v1424
        %v1426 = vmul.f32 %v1422, %v1308
        %v1427 = vadd.f32 %v1426, %v1425
        %1429 = vset.pattern.permute.xlu0 0
        %1430 = vperm.xlu0 %1429, %v1422
        %v1431 = vpop.permute.xlu0 %1430
        %v1433 = vmul.f32 %v1431, %v1321
        %1435 = vset.pattern.permute.xlu0 0
        %1436 = vperm.xlu0 %1435, %v1425
        %v1437 = vpop.permute.xlu0 %1436
        %v1439 = vmul.f32 %v1437, %v1413
        %v1440 = vadd.f32 %v1433, %v1439
        %s1441 = scalar_lea.vmem [#allocation2], 56
        %v1442 = vld [vmem:[%s1441] sm:$0xff]
        %v1444 = vsel %vm576, %v1398, 0
        %1446 = vmatprep.subr.mxu0 0.0
        %1447 = vmatpush1.msra.mxu0 %v423
        %1448 = vmatprep.subr.mxu0 0.0
        %1449 = vmatpush1.msra.mxu0 %v424
        %1450 = vmatprep.subr.mxu0 0.0
        %1451 = vmatpush1.msra.mxu0 %v425
        %1452 = vmatprep.subr.mxu0 0.0
        %1453 = vmatpush1.msra.mxu0 %v426
        %1454 = vmatprep.subr.mxu0 0.0
        %1455 = vmatpush1.msra.mxu0 0.0
        %1456 = vmatprep.subr.mxu0 0.0
        %1457 = vmatpush1.msra.mxu0 0.0
        %1458 = vmatprep.subr.mxu0 0.0
        %1459 = vmatpush1.msra.mxu0 0.0
        %1460 = vmatprep.subr.mxu0 0.0
        %1461 = vmatpush1.msra.mxu0 0.0
        %1462 = vmatprep.subr.mxu0 0.0
        %1463 = vmatpush1.msra.mxu0 0.0
        %1464 = vmatprep.subr.mxu0 0.0
        %1465 = vmatpush1.msra.mxu0 0.0
        %1466 = vmatprep.subr.mxu0 0.0
        %1467 = vmatpush1.msra.mxu0 0.0
        %1468 = vmatprep.subr.mxu0 0.0
        %1469 = vmatpush1.msra.mxu0 0.0
        %1470 = vmatprep.subr.mxu0 0.0
        %1471 = vmatpush1.msra.mxu0 0.0
        %1472 = vmatprep.subr.mxu0 0.0
        %1473 = vmatpush1.msra.mxu0 0.0
        %1474 = vmatprep.subr.mxu0 0.0
        %1475 = vmatpush1.msra.mxu0 0.0
        %1476 = vmatprep.subr.mxu0 0.0
        %1477 = vmatpush1.msra.mxu0 0.0
        %1478 = vmatprep.subr.mxu0 0.0
        %1479 = vmatpush1.msra.mxu0 0.0
        %1480 = vmatprep.subr.mxu0 0.0
        %1481 = vmatpush1.msra.mxu0 0.0
        %1482 = vmatprep.subr.mxu0 0.0
        %1483 = vmatpush1.msra.mxu0 0.0
        %1484 = vmatprep.subr.mxu0 0.0
        %1485 = vmatpush1.msra.mxu0 0.0
        %1486 = vmatprep.subr.mxu0 0.0
        %1487 = vmatpush1.msra.mxu0 0.0
        %1488 = vmatprep.subr.mxu0 0.0
        %1489 = vmatpush1.msra.mxu0 0.0
        %1490 = vmatprep.subr.mxu0 0.0
        %1491 = vmatpush1.msra.mxu0 0.0
        %1492 = vmatprep.subr.mxu0 0.0
        %1493 = vmatpush1.msra.mxu0 0.0
        %1494 = vmatprep.subr.mxu0 0.0
        %1495 = vmatpush1.msra.mxu0 0.0
        %1496 = vmatprep.subr.mxu0 0.0
        %1497 = vmatpush1.msra.mxu0 0.0
        %1498 = vmatprep.subr.mxu0 0.0
        %1499 = vmatpush1.msra.mxu0 0.0
        %1500 = vmatprep.subr.mxu0 0.0
        %1501 = vmatpush1.msra.mxu0 0.0
        %1502 = vmatprep.subr.mxu0 0.0
        %1503 = vmatpush1.msra.mxu0 0.0
        %1504 = vmatprep.subr.mxu0 0.0
        %1505 = vmatpush1.msra.mxu0 0.0
        %1506 = vmatprep.subr.mxu0 0.0
        %1507 = vmatpush1.msra.mxu0 0.0
        %1508 = vmatprep.subr.mxu0 0.0
        %1509 = vmatpush1.msra.mxu0 0.0
        %1510 = vmatprep.mubr.f32.mxu0 0.0
        %1511 = vmatmul.mubr.f32.gmra.mrb[0].mxu0 %v1444
        %v1512 = vpop.f32.mrb[0].mxu0
        %v1513 = vadd.f32 0.0, %v1512
        %v1514 = vpop.f32.mrb[0].mxu0
        %1515 = vdwg.mxu0
        %v1516 = vadd.f32 %v1442, %v1513
        %v1517 = vmax.f32 %v1516, 0.0
        %v1518 = vsel %vm576, %v1517, 0.0
        %1519 = vadd.xlane.f32.xlu0 %v1518
        %v1520 = vpop.xlane.xlu0 %1519
        %v1521 = vmul.f32 %v1520, %v664
        %v1522 = vsub.f32 %v1517, %v1521
        %v1523 = vmul.f32 %v1522, %v1522
        %v1524 = vsel %vm576, %v1523, 0.0
        %1525 = vadd.xlane.f32.xlu0 %v1524
        %v1526 = vpop.xlane.xlu0 %1525
        %v1527 = vmul.f32 %v1526, %v664
        %v1528 = vadd.f32 %v1527, 1e-05
        %v1529 = vrsqrt.pop %v1528
        %v1530 = vmul.f32 %v1522, %v1529
        %v1531 = vmul.f32 %v1530, %v679
        %v1532 = vadd.f32 %v1531, %v686
        %v1533 = vmul.f32 %v1532, %v693
        %v1534 = vsel %vm576, %v1533, 0.0
        %1535 = vadd.xlane.f32.xlu0 %v1534
        %v1536 = vpop.xlane.xlu0 %1535
        %v1537 = vadd.f32 %v1536, %v703
        %v1538 = vmax.f32 %v1419, %v1537
        %v1539 = vsub.f32 %v1419, %v1538
        %v1540 = vmul.f32 %v1539, 1.442695
        %v1541 = vpow.pop %v1540
        %v1542 = vsub.f32 %v1537, %v1538
        %v1543 = vmul.f32 %v1542, 1.442695
        %v1544 = vpow.pop %v1543
        %v1545 = vmul.f32 %v1541, %v1427
        %v1546 = vadd.f32 %v1545, %v1544
        %1548 = vset.pattern.permute.xlu0 0
        %1549 = vperm.xlu0 %1548, %v1541
        %v1550 = vpop.permute.xlu0 %1549
        %v1552 = vmul.f32 %v1550, %v1440
        %1554 = vset.pattern.permute.xlu0 0
        %1555 = vperm.xlu0 %1554, %v1544
        %v1556 = vpop.permute.xlu0 %1555
        %v1558 = vmul.f32 %v1556, %v1532
        %v1559 = vadd.f32 %v1552, %v1558
        %v1560 = vrcp.pop %v1546
        %1562 = vset.pattern.permute.xlu0 0
        %1563 = vperm.xlu0 %1562, %v1560
        %v1564 = vpop.permute.xlu0 %1563
        %v1566 = vmul.f32 %v1559, %v1564
        %v1567 = vld [vmem:[%s8] sm:$0xff]
        %v1568 = vld [vmem:[%s8 + $0x8] sm:$0xff]
        %v1569 = vld [vmem:[%s8 + $0x10] sm:$0xff]
        %v1570 = vld [vmem:[%s8 + $0x18] sm:$0xff]
        %v1571 = vld [vmem:[%s9] sm:$0x1]
        %v1573 = vlaneseq
        %v1574 = vshrl.u32 %v1573, 7
        %v1575 = vsub.s32 0, %v1574
        %v1576 = vrot.slane %v1571, %v1575
        %v1579 = vsel %vm576, %v1566, 0
        %1581 = vmatprep.subr.mxu0 0.0
        %1582 = vmatpush1.msra.mxu0 %v1567
        %1583 = vmatprep.subr.mxu0 0.0
        %1584 = vmatpush1.msra.mxu0 %v1568
        %1585 = vmatprep.subr.mxu0 0.0
        %1586 = vmatpush1.msra.mxu0 %v1569
        %1587 = vmatprep.subr.mxu0 0.0
        %1588 = vmatpush1.msra.mxu0 %v1570
        %1589 = vmatprep.subr.mxu0 0.0
        %1590 = vmatpush1.msra.mxu0 0.0
        %1591 = vmatprep.subr.mxu0 0.0
        %1592 = vmatpush1.msra.mxu0 0.0
        %1593 = vmatprep.subr.mxu0 0.0
        %1594 = vmatpush1.msra.mxu0 0.0
        %1595 = vmatprep.subr.mxu0 0.0
        %1596 = vmatpush1.msra.mxu0 0.0
        %1597 = vmatprep.subr.mxu0 0.0
        %1598 = vmatpush1.msra.mxu0 0.0
        %1599 = vmatprep.subr.mxu0 0.0
        %1600 = vmatpush1.msra.mxu0 0.0
        %1601 = vmatprep.subr.mxu0 0.0
        %1602 = vmatpush1.msra.mxu0 0.0
        %1603 = vmatprep.subr.mxu0 0.0
        %1604 = vmatpush1.msra.mxu0 0.0
        %1605 = vmatprep.subr.mxu0 0.0
        %1606 = vmatpush1.msra.mxu0 0.0
        %1607 = vmatprep.subr.mxu0 0.0
        %1608 = vmatpush1.msra.mxu0 0.0
        %1609 = vmatprep.subr.mxu0 0.0
        %1610 = vmatpush1.msra.mxu0 0.0
        %1611 = vmatprep.subr.mxu0 0.0
        %1612 = vmatpush1.msra.mxu0 0.0
        %1613 = vmatprep.subr.mxu0 0.0
        %1614 = vmatpush1.msra.mxu0 0.0
        %1615 = vmatprep.subr.mxu0 0.0
        %1616 = vmatpush1.msra.mxu0 0.0
        %1617 = vmatprep.subr.mxu0 0.0
        %1618 = vmatpush1.msra.mxu0 0.0
        %1619 = vmatprep.subr.mxu0 0.0
        %1620 = vmatpush1.msra.mxu0 0.0
        %1621 = vmatprep.subr.mxu0 0.0
        %1622 = vmatpush1.msra.mxu0 0.0
        %1623 = vmatprep.subr.mxu0 0.0
        %1624 = vmatpush1.msra.mxu0 0.0
        %1625 = vmatprep.subr.mxu0 0.0
        %1626 = vmatpush1.msra.mxu0 0.0
        %1627 = vmatprep.subr.mxu0 0.0
        %1628 = vmatpush1.msra.mxu0 0.0
        %1629 = vmatprep.subr.mxu0 0.0
        %1630 = vmatpush1.msra.mxu0 0.0
        %1631 = vmatprep.subr.mxu0 0.0
        %1632 = vmatpush1.msra.mxu0 0.0
        %1633 = vmatprep.subr.mxu0 0.0
        %1634 = vmatpush1.msra.mxu0 0.0
        %1635 = vmatprep.subr.mxu0 0.0
        %1636 = vmatpush1.msra.mxu0 0.0
        %1637 = vmatprep.subr.mxu0 0.0
        %1638 = vmatpush1.msra.mxu0 0.0
        %1639 = vmatprep.subr.mxu0 0.0
        %1640 = vmatpush1.msra.mxu0 0.0
        %1641 = vmatprep.subr.mxu0 0.0
        %1642 = vmatpush1.msra.mxu0 0.0
        %1643 = vmatprep.subr.mxu0 0.0
        %1644 = vmatpush1.msra.mxu0 0.0
        %1645 = vmatprep.mubr.f32.mxu0 0.0
        %1646 = vmatmul.mubr.f32.gmra.mrb[0].mxu0 %v1579
        %v1647 = vpop.f32.mrb[0].mxu0
        %v1648 = vadd.f32 %v1576, %v1647
        %v1649 = vpop.f32.mrb[0].mxu0
        %1650 = vdwg.mxu0
        %1651 = vst [vmem:[%s421] sm:$0xff] %v1648
        %s1652 = sand.u32 %s249, 1
        %s1653 = scalar_lea.sflag [#allocation6], %s1652
        %s1654 = sand.u32 %s249, 1
        %s1655 = smul.addr %s1654, 8
        %s1656 = scalar_lea.vmem [#allocation5], %s1655
        // Predicated region
        $region99: #{tpu_custom_call.1} parent=93 // pred_check
          %p1657 = pneg %p259
        $region100: #{tpu_custom_call.1} parent=93 // pred_check_branch
          %1659 = sbr.rel (%p1657) target = $region102
        $region101: #{tpu_custom_call.1} parent=93 // pred_region
          %s1661 = ssub.s32 128, 128
          %1662 = vsyncadd %s1653, %s1661
          %s1663 = smul.addr %s26, 128
          %s1664 = scalar_lea.hbm %s10, %s1663
          %s1666 = sshll.u32 %s1656, 4
          %s1667 = int_to_ptr.vmem [resolvable:$true] %s1666
          %1669 = dma.vmem_to_hbm [thread:$0]  %s1667, 128, %s1664, %s1653
        $region102: #{tpu_custom_call.1} parent=93 // pred_fallthru
          _
      $region94: #{tpu_custom_call.1} parent=5 // pred_fallthru
        _
      %p1670 = scmp.le.s32.totalorder 2, %s21
      // Predicated region
      $region103: #{tpu_custom_call.1} parent=5 // pred_check
        %p1671 = pneg %p1670
      $region104: #{tpu_custom_call.1} parent=5 // pred_check_branch
        %1673 = sbr.rel (%p1671) target = $region106
      $region105: #{tpu_custom_call.1} parent=5 // pred_region
        %s1674 = ssub.s32 %s21, 2
        // Predicated region
        $region107: #{tpu_custom_call.1} parent=105 // pred_check
          %p1675 = pneg %p265
        $region108: #{tpu_custom_call.1} parent=105 // pred_check_branch
          %1677 = sbr.rel (%p1675) target = $region110
        $region109: #{tpu_custom_call.1} parent=105 // pred_region
          %s1678 = sand.u32 %s250, 1
          %s1679 = scalar_lea.sflag [#allocation6], %s1678
          %s1680 = sand.u32 %s250, 1
          %s1681 = smul.addr %s1680, 8
          %s1682 = scalar_lea.vmem [#allocation5], %s1681
          %1683 = dma.done %s1679, 128
        $region110: #{tpu_custom_call.1} parent=105 // pred_fallthru
          _
      $region106: #{tpu_custom_call.1} parent=5 // pred_fallthru
        _
    $region6: #{tpu_custom_call.1} parent=1 // loop_footer
      %s25 = sadd.s32 1, %s21
    $region7: #{tpu_custom_call.1} parent=1 // loop_footer_branch
      %20 = sbr.rel target = $region3
    $region8: #{tpu_custom_call.1} parent=1 // loop_exit
      _
    %1684 = vsyncpa [#allocation6], 1
    %s1685 = scalar_lea.sflag [#allocation6], 1
    %1686 = vsyncpa %s1685, 1

</llo_original>
